<compile_context>
chip_gen: v7x
topology: tpu7x:2x2x1
jax: 0.10.0
libtpu: 0.0.40
codegen_flags: <defaults>
</compile_context>

<pallas_src>
import functools

import jax
import jax.numpy as jnp
from jax.experimental import pallas as pl
from jax.experimental.pallas import tpu as pltpu


def _round_up(n, m):
    return ((n + m - 1) // m) * m


def _dqn_kernel(x_ref, w_in_ref, b_in_ref, w_h_ref, b_h_ref,
                w_out_ref, b_out_ref, o_ref, *, n_layers):
    # In-kernel bf16 cast of the activation tile (free on VPU under the MXU);
    # halves x-side HBM traffic vs. a wrapper-side cast+copy.
    x_bf = x_ref[...].astype(jnp.bfloat16)                            # (TB, S)

    # input layer: f32 MXU accumulation, fused bias + ReLU + bf16 downcast
    h = jnp.dot(x_bf, w_in_ref[...], preferred_element_type=jnp.float32)
    h_bf = jnp.maximum(h + b_in_ref[...], 0.0).astype(jnp.bfloat16)   # (TB, H)

    # hidden layers (static unroll; biases loaded once, outside the loop)
    b_h_all = b_h_ref[...]                                            # (L, H) f32
    for k in range(n_layers):
        h = jnp.dot(h_bf, w_h_ref[k], preferred_element_type=jnp.float32)
        h_bf = jnp.maximum(h + b_h_all[k:k + 1, :], 0.0).astype(jnp.bfloat16)

    # output layer (no activation); narrow (TB, A) store -> minimal writeback
    out = jnp.dot(h_bf, w_out_ref[...], preferred_element_type=jnp.float32)
    o_ref[...] = (out + b_out_ref[...]).astype(o_ref.dtype)


def dqn_forward(x, params, *, n_layers, tile_b=1024):
    """x: (batch, state_dim) float32. params: dict of pre-transposed f32 weights."""
    batch, state_dim = x.shape
    hidden = params["w_in"].shape[1]
    action_dim = params["w_out"].shape[1]

    # --- batch tile selection ------------------------------------------------
    b_pad8 = _round_up(batch, 8)
    tb = min(tile_b, b_pad8)
    if tb >= b_pad8 and b_pad8 > 8:
        # v7x has 2 TensorCores: make sure the "parallel" batch grid has at
        # least 2 steps so the second core gets work (no-op on v5e/v6e).
        tb = _round_up(-(-b_pad8 // 2), 8)
    b_pad = _round_up(batch, tb)

    # x stays f32 (cast to bf16 inside the kernel); pad the batch only if
    # needed so the common divisible case has no wrapper-side pass over x.
    x_in = x
    if b_pad != batch:
        x_in = jnp.pad(x, ((0, b_pad - batch), (0, 0)))

    # bf16 weights at the MXU inputs, f32 biases (bias/ReLU done in f32).
    w_in = params["w_in"].astype(jnp.bfloat16)
    w_h = params["w_h"].astype(jnp.bfloat16)
    w_out = params["w_out"].astype(jnp.bfloat16)
    b_in = params["b_in"].astype(jnp.float32)                  # (1, H)
    b_h = params["b_h"].astype(jnp.float32)                    # (L, H)
    b_out = params["b_out"].astype(jnp.float32)                # (1, A)

    kernel = functools.partial(_dqn_kernel, n_layers=n_layers)
    grid = (pl.cdiv(b_pad, tb),)

    def run(weight_buffer_count):
        if weight_buffer_count is None:
            def wspec(shape, imap):
                return pl.BlockSpec(shape, imap)
            wb = 2
        else:
            def wspec(shape, imap):
                return pl.BlockSpec(
                    shape, imap,
                    pipeline_mode=pl.Buffered(weight_buffer_count))
            wb = weight_buffer_count

        # Explicit VMEM budget: resident weights/biases (x buffer count)
        # + double-buffered x/out tiles + a few (tb, H) f32 temporaries.
        weight_bytes = 2 * (w_in.size + w_h.size + w_out.size)       # bf16
        bias_bytes = 4 * (b_in.size + b_h.size + b_out.size)         # f32
        io_bytes = 2 * (tb * state_dim * 4 + tb * action_dim * 4)
        act_bytes = 6 * tb * hidden * 4
        vmem_limit = wb * (weight_bytes + bias_bytes) + io_bytes + act_bytes
        vmem_limit = int(min(max(vmem_limit + (4 << 20), 16 << 20), 64 << 20))

        return pl.pallas_call(
            kernel,
            out_shape=jax.ShapeDtypeStruct((b_pad, action_dim), jnp.float32),
            grid=grid,
            in_specs=[
                # batch-tiled activation tile (f32; cast in-kernel)
                pl.BlockSpec((tb, state_dim), lambda i: (i, 0)),
                # weights / biases: constant index_map -> VMEM-resident,
                # single-buffered (never re-fetched across grid steps)
                wspec((state_dim, hidden), lambda i: (0, 0)),
                wspec((1, hidden), lambda i: (0, 0)),
                wspec((n_layers, hidden, hidden), lambda i: (0, 0, 0)),
                wspec((n_layers, hidden), lambda i: (0, 0)),
                wspec((hidden, action_dim), lambda i: (0, 0)),
                wspec((1, action_dim), lambda i: (0, 0)),
            ],
            out_specs=pl.BlockSpec((tb, action_dim), lambda i: (i, 0)),
            compiler_params=pltpu.CompilerParams(
                dimension_semantics=("parallel",),   # shard batch tiles on v7x
                vmem_limit_bytes=vmem_limit),
        )(x_in, w_in, b_in, w_h, b_h, w_out, b_out)

    try:
        out = run(1)      # single-buffer the grid-invariant operands
    except Exception:     # pragma: no cover - pipeline_mode not supported here
        out = run(None)   # fall back to default (double-buffered) BlockSpecs

    return out[:batch] if b_pad != batch else out


def init_params(key, state_dim, action_dim, n_layers, hidden_size):
    """Deterministic synthetic init (uniform, like PyTorch's default scale)."""
    ks = jax.random.split(key, 6)

    def u(k, shape, fan_in):
        bound = 1.0 / jnp.sqrt(fan_in)
        return jax.random.uniform(k, shape, jnp.float32, -bound, bound)

    return {
        # weights stored (in_features, out_features) == PyTorch W.T
        "w_in":  u(ks[0], (state_dim, hidden_size), state_dim),
        "b_in":  u(ks[1], (1, hidden_size), state_dim),
        "w_h":   u(ks[2], (n_layers, hidden_size, hidden_size), hidden_size),
        "b_h":   u(ks[3], (n_layers, hidden_size), hidden_size),
        "w_out": u(ks[4], (hidden_size, action_dim), hidden_size),
        "b_out": u(ks[5], (1, action_dim), hidden_size),
    }


def dqn_reference_bf16(x, params, *, n_layers):
    """Pure-JAX reference mirroring the kernel's bf16-input / f32-accum dots."""
    bf = jnp.bfloat16
    h = jnp.dot(x.astype(bf), params["w_in"].astype(bf),
                preferred_element_type=jnp.float32) + params["b_in"]
    h = jnp.maximum(h, 0.0)
    for k in range(n_layers):
        h = jnp.dot(h.astype(bf), params["w_h"][k].astype(bf),
                    preferred_element_type=jnp.float32) + params["b_h"][k][None, :]
        h = jnp.maximum(h, 0.0)
    return jnp.dot(h.astype(bf), params["w_out"].astype(bf),
                   preferred_element_type=jnp.float32) + params["b_out"]


def dqn_reference_f32(x, params, *, n_layers):
    """Full-f32 reference matching the PyTorch module's arithmetic."""
    h = jnp.maximum(x @ params["w_in"] + params["b_in"], 0.0)
    for k in range(n_layers):
        h = jnp.maximum(h @ params["w_h"][k] + params["b_h"][k][None, :], 0.0)
    return h @ params["w_out"] + params["b_out"]


if __name__ == "__main__":
    # Small shapes consistent with the module's forward.
    # hidden_size=128 keeps hidden activations/weights lane-dense (128 lanes).
    batch, state_dim, action_dim, n_layers, hidden_size = 64, 16, 4, 2, 128

    key = jax.random.PRNGKey(0)
    k_x, k_p = jax.random.split(key)
    x = jax.random.normal(k_x, (batch, state_dim), dtype=jnp.float32)
    params = init_params(k_p, state_dim, action_dim, n_layers, hidden_size)

    out = dqn_forward(x, params, n_layers=n_layers)
    out = jax.block_until_ready(out)
    assert out.shape == (batch, action_dim)

    # Tight check vs. a reference that mirrors the kernel's bf16 MXU rounding.
    ref_bf = dqn_reference_bf16(x, params, n_layers=n_layers)
    assert jnp.allclose(out, ref_bf, atol=2e-2, rtol=2e-2), (
        float(jnp.max(jnp.abs(out - ref_bf))))

    # Looser check vs. the true f32 module semantics (bf16 rounding at MXU inputs).
    ref_f32 = dqn_reference_f32(x, params, n_layers=n_layers)
    assert jnp.allclose(out, ref_f32, atol=6e-2, rtol=6e-2), (
        float(jnp.max(jnp.abs(out - ref_f32))))

    print("KERNEL_OK")
</pallas_src>

<mosaic_0001>
module attributes {stable_mosaic.version = 11 : i64} {
  func.func @_dqn_kernel(%arg0: i32, %arg1: memref<32x16xf32, #tpu.memory_space<vmem>>, %arg2: memref<16x128xbf16, #tpu.memory_space<vmem>>, %arg3: memref<1x128xf32, #tpu.memory_space<vmem>>, %arg4: memref<2x128x128xbf16, #tpu.memory_space<vmem>>, %arg5: memref<2x128xf32, #tpu.memory_space<vmem>>, %arg6: memref<128x4xbf16, #tpu.memory_space<vmem>>, %arg7: memref<1x4xf32, #tpu.memory_space<vmem>>, %arg8: memref<32x4xf32, #tpu.memory_space<vmem>>) attributes {dimension_semantics = [#tpu.dimension_semantics<parallel>], iteration_bounds = array<i64: 2>, scalar_prefetch = 0 : i64, scratch_operands = 0 : i64, tpu.core_type = #tpu.core_type<tc>, window_params = [{transform_indices = @transform_0, window_bounds = array<i64: 32, 16>}, {pipeline_mode = #tpu.pipeline_mode<synchronous>, transform_indices = @transform_1, window_bounds = array<i64: 16, 128>}, {pipeline_mode = #tpu.pipeline_mode<synchronous>, transform_indices = @transform_2, window_bounds = array<i64: 1, 128>}, {pipeline_mode = #tpu.pipeline_mode<synchronous>, transform_indices = @transform_3, window_bounds = array<i64: 2, 128, 128>}, {pipeline_mode = #tpu.pipeline_mode<synchronous>, transform_indices = @transform_4, window_bounds = array<i64: 2, 128>}, {pipeline_mode = #tpu.pipeline_mode<synchronous>, transform_indices = @transform_5, window_bounds = array<i64: 128, 4>}, {pipeline_mode = #tpu.pipeline_mode<synchronous>, transform_indices = @transform_6, window_bounds = array<i64: 1, 4>}, {transform_indices = @transform_7, window_bounds = array<i64: 32, 4>}]} {
    %c0 = arith.constant 0 : index
    %c0_0 = arith.constant 0 : index
    %0 = vector.load %arg1[%c0, %c0_0] : memref<32x16xf32, #tpu.memory_space<vmem>>, vector<32x16xf32>
    %1 = arith.truncf %0 : vector<32x16xf32> to vector<32x16xbf16>
    %c0_1 = arith.constant 0 : index
    %c0_2 = arith.constant 0 : index
    %2 = vector.load %arg2[%c0_1, %c0_2] : memref<16x128xbf16, #tpu.memory_space<vmem>>, vector<16x128xbf16>
    %cst = arith.constant dense<0.000000e+00> : vector<32x128xf32>
    %3 = tpu.matmul %1, %2, %cst {dimension_numbers = #tpu.dot_dimension_numbers<[1], [0], [0], [1], [0, 0, 1, 1], [], []>} : vector<32x16xbf16>, vector<16x128xbf16>, vector<32x128xf32> -> vector<32x128xf32>
    %c0_3 = arith.constant 0 : index
    %c0_4 = arith.constant 0 : index
    %4 = vector.load %arg3[%c0_3, %c0_4] : memref<1x128xf32, #tpu.memory_space<vmem>>, vector<1x128xf32>
    %5 = vector.broadcast %4 : vector<1x128xf32> to vector<32x128xf32>
    %6 = arith.addf %3, %5 : vector<32x128xf32>
    %cst_5 = arith.constant 0.000000e+00 : f32
    %7 = vector.broadcast %cst_5 : f32 to vector<32x128xf32>
    %8 = arith.maximumf %6, %7 : vector<32x128xf32>
    %9 = arith.truncf %8 : vector<32x128xf32> to vector<32x128xbf16>
    %c0_6 = arith.constant 0 : index
    %c0_7 = arith.constant 0 : index
    %10 = vector.load %arg5[%c0_6, %c0_7] : memref<2x128xf32, #tpu.memory_space<vmem>>, vector<2x128xf32>
    %c0_8 = arith.constant 0 : index
    %c0_9 = arith.constant 0 : index
    %c0_10 = arith.constant 0 : index
    %11 = vector.load %arg4[%c0_8, %c0_9, %c0_10] : memref<2x128x128xbf16, #tpu.memory_space<vmem>>, vector<1x128x128xbf16>
    %12 = vector.shape_cast %11 : vector<1x128x128xbf16> to vector<128x128xbf16>
    %cst_11 = arith.constant dense<0.000000e+00> : vector<32x128xf32>
    %13 = tpu.matmul %9, %12, %cst_11 {dimension_numbers = #tpu.dot_dimension_numbers<[1], [0], [0], [1], [0, 0, 1, 1], [], []>} : vector<32x128xbf16>, vector<128x128xbf16>, vector<32x128xf32> -> vector<32x128xf32>
    %14 = vector.extract_strided_slice %10 {offsets = [0, 0], sizes = [1, 128], strides = [1, 1]} : vector<2x128xf32> to vector<1x128xf32>
    %15 = vector.broadcast %14 : vector<1x128xf32> to vector<32x128xf32>
    %16 = arith.addf %13, %15 : vector<32x128xf32>
    %cst_12 = arith.constant 0.000000e+00 : f32
    %17 = vector.broadcast %cst_12 : f32 to vector<32x128xf32>
    %18 = arith.maximumf %16, %17 : vector<32x128xf32>
    %19 = arith.truncf %18 : vector<32x128xf32> to vector<32x128xbf16>
    %c1 = arith.constant 1 : index
    %c0_13 = arith.constant 0 : index
    %c0_14 = arith.constant 0 : index
    %20 = vector.load %arg4[%c1, %c0_13, %c0_14] : memref<2x128x128xbf16, #tpu.memory_space<vmem>>, vector<1x128x128xbf16>
    %21 = vector.shape_cast %20 : vector<1x128x128xbf16> to vector<128x128xbf16>
    %cst_15 = arith.constant dense<0.000000e+00> : vector<32x128xf32>
    %22 = tpu.matmul %19, %21, %cst_15 {dimension_numbers = #tpu.dot_dimension_numbers<[1], [0], [0], [1], [0, 0, 1, 1], [], []>} : vector<32x128xbf16>, vector<128x128xbf16>, vector<32x128xf32> -> vector<32x128xf32>
    %23 = vector.extract_strided_slice %10 {offsets = [1, 0], sizes = [1, 128], strides = [1, 1]} : vector<2x128xf32> to vector<1x128xf32>
    %24 = vector.broadcast %23 : vector<1x128xf32> to vector<32x128xf32>
    %25 = arith.addf %22, %24 : vector<32x128xf32>
    %cst_16 = arith.constant 0.000000e+00 : f32
    %26 = vector.broadcast %cst_16 : f32 to vector<32x128xf32>
    %27 = arith.maximumf %25, %26 : vector<32x128xf32>
    %28 = arith.truncf %27 : vector<32x128xf32> to vector<32x128xbf16>
    %c0_17 = arith.constant 0 : index
    %c0_18 = arith.constant 0 : index
    %29 = vector.load %arg6[%c0_17, %c0_18] : memref<128x4xbf16, #tpu.memory_space<vmem>>, vector<128x4xbf16>
    %cst_19 = arith.constant dense<0.000000e+00> : vector<32x4xf32>
    %30 = tpu.matmul %28, %29, %cst_19 {dimension_numbers = #tpu.dot_dimension_numbers<[1], [0], [0], [1], [0, 0, 1, 1], [], []>} : vector<32x128xbf16>, vector<128x4xbf16>, vector<32x4xf32> -> vector<32x4xf32>
    %c0_20 = arith.constant 0 : index
    %c0_21 = arith.constant 0 : index
    %31 = vector.load %arg7[%c0_20, %c0_21] : memref<1x4xf32, #tpu.memory_space<vmem>>, vector<1x4xf32>
    %32 = vector.broadcast %31 : vector<1x4xf32> to vector<32x4xf32>
    %33 = arith.addf %30, %32 : vector<32x4xf32>
    %c0_22 = arith.constant 0 : index
    %c0_23 = arith.constant 0 : index
    %34 = vector.load %arg8[%c0_22, %c0_23] : memref<32x4xf32, #tpu.memory_space<vmem>>, vector<32x4xf32>
    tpu.vector_store %arg8[%c0_22, %c0_23], %33 {strides = array<i32>} : memref<32x4xf32, #tpu.memory_space<vmem>>, vector<32x4xf32>,
    return
  }
  func.func @transform_0(%arg0: i32) -> (i32, i32) {
    %c0_i32 = arith.constant 0 : i32
    %c0_i32_0 = arith.constant 0 : i32
    return %arg0, %c0_i32 : i32, i32
  }
  func.func @transform_1(%arg0: i32) -> (i32, i32) {
    %c0_i32 = arith.constant 0 : i32
    %c0_i32_0 = arith.constant 0 : i32
    %c0_i32_1 = arith.constant 0 : i32
    return %c0_i32, %c0_i32_0 : i32, i32
  }
  func.func @transform_2(%arg0: i32) -> (i32, i32) {
    %c0_i32 = arith.constant 0 : i32
    %c0_i32_0 = arith.constant 0 : i32
    %c0_i32_1 = arith.constant 0 : i32
    return %c0_i32, %c0_i32_0 : i32, i32
  }
  func.func @transform_3(%arg0: i32) -> (i32, i32, i32) {
    %c0_i32 = arith.constant 0 : i32
    %c0_i32_0 = arith.constant 0 : i32
    %c0_i32_1 = arith.constant 0 : i32
    %c0_i32_2 = arith.constant 0 : i32
    return %c0_i32, %c0_i32_0, %c0_i32_1 : i32, i32, i32
  }
  func.func @transform_4(%arg0: i32) -> (i32, i32) {
    %c0_i32 = arith.constant 0 : i32
    %c0_i32_0 = arith.constant 0 : i32
    %c0_i32_1 = arith.constant 0 : i32
    return %c0_i32, %c0_i32_0 : i32, i32
  }
  func.func @transform_5(%arg0: i32) -> (i32, i32) {
    %c0_i32 = arith.constant 0 : i32
    %c0_i32_0 = arith.constant 0 : i32
    %c0_i32_1 = arith.constant 0 : i32
    return %c0_i32, %c0_i32_0 : i32, i32
  }
  func.func @transform_6(%arg0: i32) -> (i32, i32) {
    %c0_i32 = arith.constant 0 : i32
    %c0_i32_0 = arith.constant 0 : i32
    %c0_i32_1 = arith.constant 0 : i32
    return %c0_i32, %c0_i32_0 : i32, i32
  }
  func.func @transform_7(%arg0: i32) -> (i32, i32) {
    %c0_i32 = arith.constant 0 : i32
    %c0_i32_0 = arith.constant 0 : i32
    return %arg0, %c0_i32 : i32, i32
  }
}

module attributes {stable_mosaic.version = 11 : i64} {
  func.func @_dqn_kernel(%arg0: i32, %arg1: memref<32x16xf32, #tpu.memory_space<vmem>>, %arg2: memref<16x128xbf16, #tpu.memory_space<vmem>>, %arg3: memref<1x128xf32, #tpu.memory_space<vmem>>, %arg4: memref<2x128x128xbf16, #tpu.memory_space<vmem>>, %arg5: memref<2x128xf32, #tpu.memory_space<vmem>>, %arg6: memref<128x4xbf16, #tpu.memory_space<vmem>>, %arg7: memref<1x4xf32, #tpu.memory_space<vmem>>, %arg8: memref<32x4xf32, #tpu.memory_space<vmem>>) attributes {dimension_semantics = [#tpu.dimension_semantics<parallel>], iteration_bounds = array<i64: 2>, scalar_prefetch = 0 : i64, scratch_operands = 0 : i64, tpu.core_type = #tpu.core_type<tc>, window_params = [{transform_indices = @transform_0, window_bounds = array<i64: 32, 16>}, {pipeline_mode = #tpu.pipeline_mode<synchronous>, transform_indices = @transform_1, window_bounds = array<i64: 16, 128>}, {pipeline_mode = #tpu.pipeline_mode<synchronous>, transform_indices = @transform_2, window_bounds = array<i64: 1, 128>}, {pipeline_mode = #tpu.pipeline_mode<synchronous>, transform_indices = @transform_3, window_bounds = array<i64: 2, 128, 128>}, {pipeline_mode = #tpu.pipeline_mode<synchronous>, transform_indices = @transform_4, window_bounds = array<i64: 2, 128>}, {pipeline_mode = #tpu.pipeline_mode<synchronous>, transform_indices = @transform_5, window_bounds = array<i64: 128, 4>}, {pipeline_mode = #tpu.pipeline_mode<synchronous>, transform_indices = @transform_6, window_bounds = array<i64: 1, 4>}, {transform_indices = @transform_7, window_bounds = array<i64: 32, 4>}]} {
    %c0 = arith.constant 0 : index
    %c0_0 = arith.constant 0 : index
    %0 = vector.load %arg1[%c0, %c0_0] : memref<32x16xf32, #tpu.memory_space<vmem>>, vector<32x16xf32>
    %1 = arith.truncf %0 : vector<32x16xf32> to vector<32x16xbf16>
    %c0_1 = arith.constant 0 : index
    %c0_2 = arith.constant 0 : index
    %2 = vector.load %arg2[%c0_1, %c0_2] : memref<16x128xbf16, #tpu.memory_space<vmem>>, vector<16x128xbf16>
    %cst = arith.constant dense<0.000000e+00> : vector<32x128xf32>
    %3 = tpu.matmul %1, %2, %cst {dimension_numbers = #tpu.dot_dimension_numbers<[1], [0], [0], [1], [0, 0, 1, 1], [], []>} : vector<32x16xbf16>, vector<16x128xbf16>, vector<32x128xf32> -> vector<32x128xf32>
    %c0_3 = arith.constant 0 : index
    %c0_4 = arith.constant 0 : index
    %4 = vector.load %arg3[%c0_3, %c0_4] : memref<1x128xf32, #tpu.memory_space<vmem>>, vector<1x128xf32>
    %5 = vector.broadcast %4 : vector<1x128xf32> to vector<32x128xf32>
    %6 = arith.addf %3, %5 : vector<32x128xf32>
    %cst_5 = arith.constant 0.000000e+00 : f32
    %7 = vector.broadcast %cst_5 : f32 to vector<32x128xf32>
    %8 = arith.maximumf %6, %7 : vector<32x128xf32>
    %9 = arith.truncf %8 : vector<32x128xf32> to vector<32x128xbf16>
    %c0_6 = arith.constant 0 : index
    %c0_7 = arith.constant 0 : index
    %10 = vector.load %arg5[%c0_6, %c0_7] : memref<2x128xf32, #tpu.memory_space<vmem>>, vector<2x128xf32>
    %c0_8 = arith.constant 0 : index
    %c0_9 = arith.constant 0 : index
    %c0_10 = arith.constant 0 : index
    %11 = vector.load %arg4[%c0_8, %c0_9, %c0_10] : memref<2x128x128xbf16, #tpu.memory_space<vmem>>, vector<1x128x128xbf16>
    %12 = vector.shape_cast %11 : vector<1x128x128xbf16> to vector<128x128xbf16>
    %cst_11 = arith.constant dense<0.000000e+00> : vector<32x128xf32>
    %13 = tpu.matmul %9, %12, %cst_11 {dimension_numbers = #tpu.dot_dimension_numbers<[1], [0], [0], [1], [0, 0, 1, 1], [], []>} : vector<32x128xbf16>, vector<128x128xbf16>, vector<32x128xf32> -> vector<32x128xf32>
    %14 = vector.extract_strided_slice %10 {offsets = [0, 0], sizes = [1, 128], strides = [1, 1]} : vector<2x128xf32> to vector<1x128xf32>
    %15 = vector.broadcast %14 : vector<1x128xf32> to vector<32x128xf32>
    %16 = arith.addf %13, %15 : vector<32x128xf32>
    %cst_12 = arith.constant 0.000000e+00 : f32
    %17 = vector.broadcast %cst_12 : f32 to vector<32x128xf32>
    %18 = arith.maximumf %16, %17 : vector<32x128xf32>
    %19 = arith.truncf %18 : vector<32x128xf32> to vector<32x128xbf16>
    %c1 = arith.constant 1 : index
    %c0_13 = arith.constant 0 : index
    %c0_14 = arith.constant 0 : index
    %20 = vector.load %arg4[%c1, %c0_13, %c0_14] : memref<2x128x128xbf16, #tpu.memory_space<vmem>>, vector<1x128x128xbf16>
    %21 = vector.shape_cast %20 : vector<1x128x128xbf16> to vector<128x128xbf16>
    %cst_15 = arith.constant dense<0.000000e+00> : vector<32x128xf32>
    %22 = tpu.matmul %19, %21, %cst_15 {dimension_numbers = #tpu.dot_dimension_numbers<[1], [0], [0], [1], [0, 0, 1, 1], [], []>} : vector<32x128xbf16>, vector<128x128xbf16>, vector<32x128xf32> -> vector<32x128xf32>
    %23 = vector.extract_strided_slice %10 {offsets = [1, 0], sizes = [1, 128], strides = [1, 1]} : vector<2x128xf32> to vector<1x128xf32>
    %24 = vector.broadcast %23 : vector<1x128xf32> to vector<32x128xf32>
    %25 = arith.addf %22, %24 : vector<32x128xf32>
    %cst_16 = arith.constant 0.000000e+00 : f32
    %26 = vector.broadcast %cst_16 : f32 to vector<32x128xf32>
    %27 = arith.maximumf %25, %26 : vector<32x128xf32>
    %28 = arith.truncf %27 : vector<32x128xf32> to vector<32x128xbf16>
    %c0_17 = arith.constant 0 : index
    %c0_18 = arith.constant 0 : index
    %29 = vector.load %arg6[%c0_17, %c0_18] : memref<128x4xbf16, #tpu.memory_space<vmem>>, vector<128x4xbf16>
    %cst_19 = arith.constant dense<0.000000e+00> : vector<32x4xf32>
    %30 = tpu.matmul %28, %29, %cst_19 {dimension_numbers = #tpu.dot_dimension_numbers<[1], [0], [0], [1], [0, 0, 1, 1], [], []>} : vector<32x128xbf16>, vector<128x4xbf16>, vector<32x4xf32> -> vector<32x4xf32>
    %c0_20 = arith.constant 0 : index
    %c0_21 = arith.constant 0 : index
    %31 = vector.load %arg7[%c0_20, %c0_21] : memref<1x4xf32, #tpu.memory_space<vmem>>, vector<1x4xf32>
    %32 = vector.broadcast %31 : vector<1x4xf32> to vector<32x4xf32>
    %33 = arith.addf %30, %32 : vector<32x4xf32>
    %c0_22 = arith.constant 0 : index
    %c0_23 = arith.constant 0 : index
    %34 = vector.load %arg8[%c0_22, %c0_23] : memref<32x4xf32, #tpu.memory_space<vmem>>, vector<32x4xf32>
    tpu.vector_store %arg8[%c0_22, %c0_23], %33 {strides = array<i32>} : memref<32x4xf32, #tpu.memory_space<vmem>>, vector<32x4xf32>,
    return
  }
  func.func @transform_0(%arg0: i32) -> (i32, i32) {
    %c0_i32 = arith.constant 0 : i32
    %c0_i32_0 = arith.constant 0 : i32
    return %arg0, %c0_i32 : i32, i32
  }
  func.func @transform_1(%arg0: i32) -> (i32, i32) {
    %c0_i32 = arith.constant 0 : i32
    %c0_i32_0 = arith.constant 0 : i32
    %c0_i32_1 = arith.constant 0 : i32
    return %c0_i32, %c0_i32_0 : i32, i32
  }
  func.func @transform_2(%arg0: i32) -> (i32, i32) {
    %c0_i32 = arith.constant 0 : i32
    %c0_i32_0 = arith.constant 0 : i32
    %c0_i32_1 = arith.constant 0 : i32
    return %c0_i32, %c0_i32_0 : i32, i32
  }
  func.func @transform_3(%arg0: i32) -> (i32, i32, i32) {
    %c0_i32 = arith.constant 0 : i32
    %c0_i32_0 = arith.constant 0 : i32
    %c0_i32_1 = arith.constant 0 : i32
    %c0_i32_2 = arith.constant 0 : i32
    return %c0_i32, %c0_i32_0, %c0_i32_1 : i32, i32, i32
  }
  func.func @transform_4(%arg0: i32) -> (i32, i32) {
    %c0_i32 = arith.constant 0 : i32
    %c0_i32_0 = arith.constant 0 : i32
    %c0_i32_1 = arith.constant 0 : i32
    return %c0_i32, %c0_i32_0 : i32, i32
  }
  func.func @transform_5(%arg0: i32) -> (i32, i32) {
    %c0_i32 = arith.constant 0 : i32
    %c0_i32_0 = arith.constant 0 : i32
    %c0_i32_1 = arith.constant 0 : i32
    return %c0_i32, %c0_i32_0 : i32, i32
  }
  func.func @transform_6(%arg0: i32) -> (i32, i32) {
    %c0_i32 = arith.constant 0 : i32
    %c0_i32_0 = arith.constant 0 : i32
    %c0_i32_1 = arith.constant 0 : i32
    return %c0_i32, %c0_i32_0 : i32, i32
  }
  func.func @transform_7(%arg0: i32) -> (i32, i32) {
    %c0_i32 = arith.constant 0 : i32
    %c0_i32_0 = arith.constant 0 : i32
    return %arg0, %c0_i32 : i32, i32
  }
}

</mosaic_0001>

<llo_original>
// kernel: tpu_custom_call.1
$region0: #{tpu_custom_call.1}
  #allocation0 [shape = 'u32[]', space=smem, size = 0x4, offset = 0x4, fixed_abs, tag = 'smem constant byte address 0x4 - core index']
  #allocation1 [shape = 'u32[144,128]{1,0:T(1,128)}', space=vmem, size = 0x12000, scoped, tag = 'internal scratch']
  %s0 = inlined_call_operand.vmem [shape: f32[64,16], index: 0, kind: input, shape index: {}]
  %s1 = inlined_call_operand.vmem [shape: bf16[16,128], index: 1, kind: input, shape index: {}]
  %s2 = inlined_call_operand.vmem [shape: f32[1,128], index: 2, kind: input, shape index: {}]
  %s3 = inlined_call_operand.vmem [shape: bf16[2,128,128], index: 3, kind: input, shape index: {}]
  %s4 = inlined_call_operand.vmem [shape: f32[2,128], index: 4, kind: input, shape index: {}]
  %s5 = inlined_call_operand.vmem [shape: bf16[128,4], index: 5, kind: input, shape index: {}]
  %s6 = inlined_call_operand.vmem [shape: f32[1,4], index: 6, kind: input, shape index: {}]
  %s7 = inlined_call_operand.vmem [shape: f32[64,4], index: 7, kind: output, shape index: {}]
  %s8 = sld [smem:[#allocation0]]
  $region61: #{tpu_custom_call.1} parent=0
    _
  %s10 = ssub.s32 1, %s8
  %s11 = scalar_select 0, %s10, %s8
  loop: start=0, step=1, limit=4
  $region2: #{tpu_custom_call.1} parent=0 // loop_pre_header
    _
  $region3: #{tpu_custom_call.1} parent=0 // loop_header
    %s13 = sphi 0, %s17
    %p14 = scmp.ge.s32.totalorder %s13, 4
    %s23 = sphi 0, %s25
    %s26 = sphi 0, %s23
    %s27 = sphi 0, %s26
    %s43 = sphi 0, %s27
    %s47 = sphi 0, %s47
    %s49 = sphi 0, %s47
    %s50 = sphi 0, %s49
    %s64 = sphi 0, %s50
    %s68 = sphi 0, %s68
    %s70 = sphi 0, %s68
    %s71 = sphi 0, %s70
    %s85 = sphi 0, %s71
    %s89 = sphi 0, %s89
    %s91 = sphi 0, %s89
    %s92 = sphi 0, %s91
    %s106 = sphi 0, %s92
    %s110 = sphi 0, %s110
    %s112 = sphi 0, %s110
    %s113 = sphi 0, %s112
    %s127 = sphi 0, %s113
    %s131 = sphi 0, %s131
    %s133 = sphi 0, %s131
    %s134 = sphi 0, %s133
    %s148 = sphi 0, %s134
    %s152 = sphi 0, %s152
    %s154 = sphi 0, %s152
    %s155 = sphi 0, %s154
    %s169 = sphi 0, %s155
    %s175 = sphi 0, %s177
    %s178 = sphi 0, %s175
    %s179 = sphi 0, %s178
    %s195 = sphi 0, %s179
  $region4: #{tpu_custom_call.1} parent=0 // loop_header_branch
    %16 = sbr.rel (%p14) target = $region8
  $region5: #{tpu_custom_call.1} parent=0 // loop_body
    %s18 = ssub.s32 %s13, 1
    %s19 = ssub.s32 %s13, 2
    %s20 = sadd.s32 %s13, 1
    %s21 = ssub.s32 %s13, %s20
    %p22 = scmp.eq.s32.totalorder %s21, 0
    %s24 = sadd.s32 %s23, 1
    %s25 = scalar_select %p22, %s23, %s24
    %p28 = pneg %p22
    %p29 = scmp.eq.s32.totalorder %s13, 1
    %p30 = por %p28, %p29
    %p31 = scmp.ne.s32.totalorder %s23, %s26
    %p32 = scmp.eq.s32.totalorder %s13, 0
    %p33 = por %p31, %p32
    %p34 = scmp.ne.s32.totalorder %s23, %s26
    %p35 = scmp.eq.s32.totalorder %s18, 1
    %p36 = por %p34, %p35
    %p37 = scmp.ne.s32.totalorder %s26, %s27
    %p38 = scmp.eq.s32.totalorder %s18, 0
    %p39 = por %p37, %p38
    %p40 = scmp.ne.s32.totalorder %s26, %s27
    %p41 = scmp.eq.s32.totalorder %s19, 1
    %p42 = por %p40, %p41
    %p44 = scmp.ne.s32.totalorder %s27, %s43
    %p45 = scmp.eq.s32.totalorder %s19, 0
    %p46 = por %p44, %p45
    %s48 = sadd.s32 %s47, 1
    %p51 = scmp.eq.s32.totalorder %s13, 1
    %p52 = scmp.ne.s32.totalorder %s47, %s49
    %p53 = scmp.eq.s32.totalorder %s13, 0
    %p54 = por %p52, %p53
    %p55 = scmp.ne.s32.totalorder %s47, %s49
    %p56 = scmp.eq.s32.totalorder %s18, 1
    %p57 = por %p55, %p56
    %p58 = scmp.ne.s32.totalorder %s49, %s50
    %p59 = scmp.eq.s32.totalorder %s18, 0
    %p60 = por %p58, %p59
    %p61 = scmp.ne.s32.totalorder %s49, %s50
    %p62 = scmp.eq.s32.totalorder %s19, 1
    %p63 = por %p61, %p62
    %p65 = scmp.ne.s32.totalorder %s50, %s64
    %p66 = scmp.eq.s32.totalorder %s19, 0
    %p67 = por %p65, %p66
    %s69 = sadd.s32 %s68, 1
    %p72 = scmp.eq.s32.totalorder %s13, 1
    %p73 = scmp.ne.s32.totalorder %s68, %s70
    %p74 = scmp.eq.s32.totalorder %s13, 0
    %p75 = por %p73, %p74
    %p76 = scmp.ne.s32.totalorder %s68, %s70
    %p77 = scmp.eq.s32.totalorder %s18, 1
    %p78 = por %p76, %p77
    %p79 = scmp.ne.s32.totalorder %s70, %s71
    %p80 = scmp.eq.s32.totalorder %s18, 0
    %p81 = por %p79, %p80
    %p82 = scmp.ne.s32.totalorder %s70, %s71
    %p83 = scmp.eq.s32.totalorder %s19, 1
    %p84 = por %p82, %p83
    %p86 = scmp.ne.s32.totalorder %s71, %s85
    %p87 = scmp.eq.s32.totalorder %s19, 0
    %p88 = por %p86, %p87
    %s90 = sadd.s32 %s89, 1
    %p93 = scmp.eq.s32.totalorder %s13, 1
    %p94 = scmp.ne.s32.totalorder %s89, %s91
    %p95 = scmp.eq.s32.totalorder %s13, 0
    %p96 = por %p94, %p95
    %p97 = scmp.ne.s32.totalorder %s89, %s91
    %p98 = scmp.eq.s32.totalorder %s18, 1
    %p99 = por %p97, %p98
    %p100 = scmp.ne.s32.totalorder %s91, %s92
    %p101 = scmp.eq.s32.totalorder %s18, 0
    %p102 = por %p100, %p101
    %p103 = scmp.ne.s32.totalorder %s91, %s92
    %p104 = scmp.eq.s32.totalorder %s19, 1
    %p105 = por %p103, %p104
    %p107 = scmp.ne.s32.totalorder %s92, %s106
    %p108 = scmp.eq.s32.totalorder %s19, 0
    %p109 = por %p107, %p108
    %s111 = sadd.s32 %s110, 1
    %p114 = scmp.eq.s32.totalorder %s13, 1
    %p115 = scmp.ne.s32.totalorder %s110, %s112
    %p116 = scmp.eq.s32.totalorder %s13, 0
    %p117 = por %p115, %p116
    %p118 = scmp.ne.s32.totalorder %s110, %s112
    %p119 = scmp.eq.s32.totalorder %s18, 1
    %p120 = por %p118, %p119
    %p121 = scmp.ne.s32.totalorder %s112, %s113
    %p122 = scmp.eq.s32.totalorder %s18, 0
    %p123 = por %p121, %p122
    %p124 = scmp.ne.s32.totalorder %s112, %s113
    %p125 = scmp.eq.s32.totalorder %s19, 1
    %p126 = por %p124, %p125
    %p128 = scmp.ne.s32.totalorder %s113, %s127
    %p129 = scmp.eq.s32.totalorder %s19, 0
    %p130 = por %p128, %p129
    %s132 = sadd.s32 %s131, 1
    %p135 = scmp.eq.s32.totalorder %s13, 1
    %p136 = scmp.ne.s32.totalorder %s131, %s133
    %p137 = scmp.eq.s32.totalorder %s13, 0
    %p138 = por %p136, %p137
    %p139 = scmp.ne.s32.totalorder %s131, %s133
    %p140 = scmp.eq.s32.totalorder %s18, 1
    %p141 = por %p139, %p140
    %p142 = scmp.ne.s32.totalorder %s133, %s134
    %p143 = scmp.eq.s32.totalorder %s18, 0
    %p144 = por %p142, %p143
    %p145 = scmp.ne.s32.totalorder %s133, %s134
    %p146 = scmp.eq.s32.totalorder %s19, 1
    %p147 = por %p145, %p146
    %p149 = scmp.ne.s32.totalorder %s134, %s148
    %p150 = scmp.eq.s32.totalorder %s19, 0
    %p151 = por %p149, %p150
    %s153 = sadd.s32 %s152, 1
    %p156 = scmp.eq.s32.totalorder %s13, 1
    %p157 = scmp.ne.s32.totalorder %s152, %s154
    %p158 = scmp.eq.s32.totalorder %s13, 0
    %p159 = por %p157, %p158
    %p160 = scmp.ne.s32.totalorder %s152, %s154
    %p161 = scmp.eq.s32.totalorder %s18, 1
    %p162 = por %p160, %p161
    %p163 = scmp.ne.s32.totalorder %s154, %s155
    %p164 = scmp.eq.s32.totalorder %s18, 0
    %p165 = por %p163, %p164
    %p166 = scmp.ne.s32.totalorder %s154, %s155
    %p167 = scmp.eq.s32.totalorder %s19, 1
    %p168 = por %p166, %p167
    %p170 = scmp.ne.s32.totalorder %s155, %s169
    %p171 = scmp.eq.s32.totalorder %s19, 0
    %p172 = por %p170, %p171
    %s173 = ssub.s32 %s13, %s20
    %p174 = scmp.eq.s32.totalorder %s173, 0
    %s176 = sadd.s32 %s175, 1
    %s177 = scalar_select %p174, %s175, %s176
    %p180 = pneg %p174
    %p181 = scmp.eq.s32.totalorder %s13, 1
    %p182 = por %p180, %p181
    %p183 = scmp.ne.s32.totalorder %s175, %s178
    %p184 = scmp.eq.s32.totalorder %s13, 0
    %p185 = por %p183, %p184
    %p186 = scmp.ne.s32.totalorder %s175, %s178
    %p187 = scmp.eq.s32.totalorder %s18, 1
    %p188 = por %p186, %p187
    %p189 = scmp.ne.s32.totalorder %s178, %s179
    %p190 = scmp.eq.s32.totalorder %s18, 0
    %p191 = por %p189, %p190
    %p192 = scmp.ne.s32.totalorder %s178, %s179
    %p193 = scmp.eq.s32.totalorder %s19, 1
    %p194 = por %p192, %p193
    %p196 = scmp.ne.s32.totalorder %s179, %s195
    %p197 = scmp.eq.s32.totalorder %s19, 0
    %p198 = por %p196, %p197
    %p199 = scmp.le.s32.totalorder 1, %s13
    %p200 = scmp.lt.s32.totalorder %s13, 3
    %p201 = pnand %p199, %p200
    %p202 = pneg %p201
    // Predicated region
    $region9: #{tpu_custom_call.1} parent=5 // pred_check
      _
    $region10: #{tpu_custom_call.1} parent=5 // pred_check_branch
      %204 = sbr.rel (%p201) target = $region12
    $region11: #{tpu_custom_call.1} parent=5 // pred_region
      %s205 = ssub.s32 %s13, 1
      // Predicated region
      $region13: #{tpu_custom_call.1} parent=11 // pred_check
        %p206 = pneg %p60
      $region14: #{tpu_custom_call.1} parent=11 // pred_check_branch
        %208 = sbr.rel (%p206) target = $region16
      $region15: #{tpu_custom_call.1} parent=11 // pred_region
        _
      $region16: #{tpu_custom_call.1} parent=11 // pred_fallthru
        _
      // Predicated region
      $region17: #{tpu_custom_call.1} parent=11 // pred_check
        %p209 = pneg %p81
      $region18: #{tpu_custom_call.1} parent=11 // pred_check_branch
        %211 = sbr.rel (%p209) target = $region20
      $region19: #{tpu_custom_call.1} parent=11 // pred_region
        _
      $region20: #{tpu_custom_call.1} parent=11 // pred_fallthru
        _
      // Predicated region
      $region21: #{tpu_custom_call.1} parent=11 // pred_check
        %p212 = pneg %p102
      $region22: #{tpu_custom_call.1} parent=11 // pred_check_branch
        %214 = sbr.rel (%p212) target = $region24
      $region23: #{tpu_custom_call.1} parent=11 // pred_region
        _
      $region24: #{tpu_custom_call.1} parent=11 // pred_fallthru
        _
      // Predicated region
      $region25: #{tpu_custom_call.1} parent=11 // pred_check
        %p215 = pneg %p123
      $region26: #{tpu_custom_call.1} parent=11 // pred_check_branch
        %217 = sbr.rel (%p215) target = $region28
      $region27: #{tpu_custom_call.1} parent=11 // pred_region
        _
      $region28: #{tpu_custom_call.1} parent=11 // pred_fallthru
        _
      // Predicated region
      $region29: #{tpu_custom_call.1} parent=11 // pred_check
        %p218 = pneg %p144
      $region30: #{tpu_custom_call.1} parent=11 // pred_check_branch
        %220 = sbr.rel (%p218) target = $region32
      $region31: #{tpu_custom_call.1} parent=11 // pred_region
        _
      $region32: #{tpu_custom_call.1} parent=11 // pred_fallthru
        _
      // Predicated region
      $region33: #{tpu_custom_call.1} parent=11 // pred_check
        %p221 = pneg %p165
      $region34: #{tpu_custom_call.1} parent=11 // pred_check_branch
        %223 = sbr.rel (%p221) target = $region36
      $region35: #{tpu_custom_call.1} parent=11 // pred_region
        _
      $region36: #{tpu_custom_call.1} parent=11 // pred_fallthru
        _
    $region12: #{tpu_custom_call.1} parent=5 // pred_fallthru
      _
    %p224 = scmp.lt.s32.totalorder %s13, 2
    // Predicated region
    $region37: #{tpu_custom_call.1} parent=5 // pred_check
      %p225 = pneg %p224
    $region38: #{tpu_custom_call.1} parent=5 // pred_check_branch
      %227 = sbr.rel (%p225) target = $region40
    $region39: #{tpu_custom_call.1} parent=5 // pred_region
      // Predicated region
      $region41: #{tpu_custom_call.1} parent=39 // pred_check
        %p228 = pneg %p33
      $region42: #{tpu_custom_call.1} parent=39 // pred_check_branch
        %230 = sbr.rel (%p228) target = $region44
      $region43: #{tpu_custom_call.1} parent=39 // pred_region
        %s231 = smul.u32 4, %s13
        %p232 = scmp.lt.s32.totalorder %s231, 7
        %s233 = scalar_select %p232, %s231, 7
        %s234 = smul.addr %s233, 8
        %s235 = scalar_lea.vmem %s0, %s234
        %s236 = smul.u32 4, %s13
      $region44: #{tpu_custom_call.1} parent=39 // pred_fallthru
        _
    $region40: #{tpu_custom_call.1} parent=5 // pred_fallthru
      _
    %p237 = scmp.le.s32.totalorder 1, %s13
    %p238 = scmp.lt.s32.totalorder %s13, 3
    %p239 = pnand %p237, %p238
    %p240 = pneg %p239
    // Predicated region
    $region45: #{tpu_custom_call.1} parent=5 // pred_check
      _
    $region46: #{tpu_custom_call.1} parent=5 // pred_check_branch
      %242 = sbr.rel (%p239) target = $region48
    $region47: #{tpu_custom_call.1} parent=5 // pred_region
      %s243 = ssub.s32 %s13, 1
      %s244 = smul.u32 4, %s18
      %p245 = scmp.lt.s32.totalorder %s244, 7
      %s246 = scalar_select %p245, %s244, 7
      %s247 = smul.addr %s246, 8
      %s248 = scalar_lea.vmem %s0, %s247
      %p249 = pneg %p39
      %p250 = pneg %p36
      %p251 = pneg %p60
      %p252 = pneg %p57
      %p253 = pneg %p81
      %p254 = pneg %p78
      %p255 = pneg %p102
      %p256 = pneg %p99
      %p257 = pneg %p123
      %p258 = pneg %p120
      %p259 = pneg %p144
      %p260 = pneg %p141
      %p261 = pneg %p165
      %p262 = pneg %p162
      %p263 = pneg %p191
      %p264 = pneg %p188
      %s265 = smul.u32 4, %s18
      %p266 = scmp.lt.s32.totalorder %s265, 7
      %s267 = scalar_select %p266, %s265, 7
      %s268 = smul.addr %s267, 8
      %s269 = scalar_lea.vmem %s7, %s268
      %s270 = smul.u32 4, %s18
      %p271 = scmp.lt.s32.totalorder %s270, 7
      %s272 = scalar_select %p271, %s270, 7
      %s273 = smul.addr %s272, 8
      %s274 = scalar_lea.vmem %s0, %s273
      %s275 = smul.u32 4, %s18
      %s276 = smul.u32 4, %s18
      %p277 = scmp.lt.s32.totalorder %s276, 7
      %s278 = scalar_select %p277, %s276, 7
      %s279 = smul.addr %s278, 8
      %s280 = scalar_lea.vmem %s7, %s279
      %s281 = smul.u32 4, %s18
      %v283 = vld [vmem:[%s274] sm:$0xff]
      %v284 = vld [vmem:[%s274 + $0x8] sm:$0xff]
      %v285 = vld [vmem:[%s274 + $0x10] sm:$0xff]
      %v286 = vld [vmem:[%s274 + $0x18] sm:$0xff]
      %v287 = vpack.c.bf16 %v284, %v283
      %v288 = vpack.c.bf16 %v286, %v285
      %v289 = vld [vmem:[%s1] sm:$0xf]
      %v290 = vld [vmem:[%s1 + $0x4] sm:$0xf]
      %v291 = vld [vmem:[%s2] sm:$0x1]
      %v293 = vlaneseq
      %v294 = vshrl.u32 %v293, 7
      %v295 = vsub.s32 0, %v294
      %v296 = vrot.slane %v291, %v295
      %v300 = vunpack.c.l.b16 %v289
      %v301 = vunpack.c.l.b16 %v290
      %v302 = vpack.c.b16 %v301, %v300
      %vm304 = vcmask 130048
      %v306 = vsel %vm304, %v287, 0
      %v309 = vsel %vm304, %v288, 0
      %311 = vmatprep.subr.bf16.mxu0 0
      %312 = vmatpush1.bf16.msra.mxu0 %v302
      %313 = vmatprep.subr.bf16.mxu0 0
      %314 = vmatpush1.bf16.msra.mxu0 0
      %315 = vmatprep.subr.bf16.mxu0 0
      %316 = vmatpush1.bf16.msra.mxu0 0
      %317 = vmatprep.subr.bf16.mxu0 0
      %318 = vmatpush1.bf16.msra.mxu0 0
      %319 = vmatprep.subr.bf16.mxu0 0
      %320 = vmatpush1.bf16.msra.mxu0 0
      %321 = vmatprep.subr.bf16.mxu0 0
      %322 = vmatpush1.bf16.msra.mxu0 0
      %323 = vmatprep.subr.bf16.mxu0 0
      %324 = vmatpush1.bf16.msra.mxu0 0
      %325 = vmatprep.subr.bf16.mxu0 0
      %326 = vmatpush1.bf16.msra.mxu0 0
      %327 = vmatprep.subr.bf16.mxu0 0
      %328 = vmatpush1.bf16.msra.mxu0 0
      %329 = vmatprep.subr.bf16.mxu0 0
      %330 = vmatpush1.bf16.msra.mxu0 0
      %331 = vmatprep.subr.bf16.mxu0 0
      %332 = vmatpush1.bf16.msra.mxu0 0
      %333 = vmatprep.subr.bf16.mxu0 0
      %334 = vmatpush1.bf16.msra.mxu0 0
      %335 = vmatprep.subr.bf16.mxu0 0
      %336 = vmatpush1.bf16.msra.mxu0 0
      %337 = vmatprep.subr.bf16.mxu0 0
      %338 = vmatpush1.bf16.msra.mxu0 0
      %339 = vmatprep.subr.bf16.mxu0 0
      %340 = vmatpush1.bf16.msra.mxu0 0
      %341 = vmatprep.subr.bf16.mxu0 0
      %342 = vmatpush1.bf16.msra.mxu0 0
      %343 = vmatprep.mubr.bf16.mxu0 0
      %344 = vmatmul.mubr.bf16.gmra.mrb[0].mxu0 %v306
      %v345 = vpop.f32.mrb[0].mxu0
      %v346 = vadd.f32 %v296, %v345
      %v347 = vpop.f32.mrb[0].mxu0
      %v348 = vpop.f32.mrb[0].mxu0
      %v349 = vadd.f32 %v296, %v348
      %v350 = vpop.f32.mrb[0].mxu0
      %351 = vmatprep.mubr.bf16.mxu0 0
      %352 = vmatmul.mubr.bf16.gmra.mrb[0].mxu0 %v309
      %v353 = vpop.f32.mrb[0].mxu0
      %v354 = vadd.f32 %v296, %v353
      %v355 = vpop.f32.mrb[0].mxu0
      %v356 = vpop.f32.mrb[0].mxu0
      %v357 = vadd.f32 %v296, %v356
      %v358 = vpop.f32.mrb[0].mxu0
      %359 = vdwg.mxu0
      %v360 = vmax.f32 %v346, 0.0
      %v361 = vmax.f32 %v349, 0.0
      %v362 = vmax.f32 %v354, 0.0
      %v363 = vmax.f32 %v357, 0.0
      %v364 = vpack.c.bf16 %v361, %v360
      %v365 = vpack.c.bf16 %v363, %v362
      %v366 = vld [vmem:[%s4] sm:$0x3]
      %v367 = vld [vmem:[%s3] sm:$0xf]
      %v368 = vld [vmem:[%s3 + $0x4] sm:$0xf]
      %v369 = vld [vmem:[%s3 + $0x8] sm:$0xf]
      %v370 = vld [vmem:[%s3 + $0xc] sm:$0xf]
      %v371 = vld [vmem:[%s3 + $0x10] sm:$0xf]
      %v372 = vld [vmem:[%s3 + $0x14] sm:$0xf]
      %v373 = vld [vmem:[%s3 + $0x18] sm:$0xf]
      %v374 = vld [vmem:[%s3 + $0x1c] sm:$0xf]
      %v375 = vld [vmem:[%s3 + $0x20] sm:$0xf]
      %v376 = vld [vmem:[%s3 + $0x24] sm:$0xf]
      %v377 = vld [vmem:[%s3 + $0x28] sm:$0xf]
      %v378 = vld [vmem:[%s3 + $0x2c] sm:$0xf]
      %v379 = vld [vmem:[%s3 + $0x30] sm:$0xf]
      %v380 = vld [vmem:[%s3 + $0x34] sm:$0xf]
      %v381 = vld [vmem:[%s3 + $0x38] sm:$0xf]
      %v382 = vld [vmem:[%s3 + $0x3c] sm:$0xf]
      %v383 = vlaneseq
      %v384 = vshrl.u32 %v383, 7
      %v385 = vsub.s32 0, %v384
      %v386 = vrot.slane %v366, %v385
      %v403 = vunpack.c.l.b16 %v367
      %v404 = vunpack.c.l.b16 %v368
      %v405 = vunpack.c.l.b16 %v369
      %v406 = vunpack.c.l.b16 %v370
      %v407 = vunpack.c.l.b16 %v371
      %v408 = vunpack.c.l.b16 %v372
      %v409 = vunpack.c.l.b16 %v373
      %v410 = vunpack.c.l.b16 %v374
      %v411 = vunpack.c.l.b16 %v375
      %v412 = vunpack.c.l.b16 %v376
      %v413 = vunpack.c.l.b16 %v377
      %v414 = vunpack.c.l.b16 %v378
      %v415 = vunpack.c.l.b16 %v379
      %v416 = vunpack.c.l.b16 %v380
      %v417 = vunpack.c.l.b16 %v381
      %v418 = vunpack.c.l.b16 %v382
      %v419 = vpack.c.b16 %v404, %v403
      %v420 = vpack.c.b16 %v406, %v405
      %v421 = vpack.c.b16 %v408, %v407
      %v422 = vpack.c.b16 %v410, %v409
      %v423 = vpack.c.b16 %v412, %v411
      %v424 = vpack.c.b16 %v414, %v413
      %v425 = vpack.c.b16 %v416, %v415
      %v426 = vpack.c.b16 %v418, %v417
      %435 = vmatprep.subr.bf16.mxu0 0
      %436 = vmatpush1.bf16.msra.mxu0 %v419
      %437 = vmatprep.subr.bf16.mxu0 0
      %438 = vmatpush1.bf16.msra.mxu0 %v420
      %439 = vmatprep.subr.bf16.mxu0 0
      %440 = vmatpush1.bf16.msra.mxu0 %v421
      %441 = vmatprep.subr.bf16.mxu0 0
      %442 = vmatpush1.bf16.msra.mxu0 %v422
      %443 = vmatprep.subr.bf16.mxu0 0
      %444 = vmatpush1.bf16.msra.mxu0 %v423
      %445 = vmatprep.subr.bf16.mxu0 0
      %446 = vmatpush1.bf16.msra.mxu0 %v424
      %447 = vmatprep.subr.bf16.mxu0 0
      %448 = vmatpush1.bf16.msra.mxu0 %v425
      %449 = vmatprep.subr.bf16.mxu0 0
      %450 = vmatpush1.bf16.msra.mxu0 %v426
      %451 = vmatprep.subr.bf16.mxu0 0
      %452 = vmatpush1.bf16.msra.mxu0 0
      %453 = vmatprep.subr.bf16.mxu0 0
      %454 = vmatpush1.bf16.msra.mxu0 0
      %455 = vmatprep.subr.bf16.mxu0 0
      %456 = vmatpush1.bf16.msra.mxu0 0
      %457 = vmatprep.subr.bf16.mxu0 0
      %458 = vmatpush1.bf16.msra.mxu0 0
      %459 = vmatprep.subr.bf16.mxu0 0
      %460 = vmatpush1.bf16.msra.mxu0 0
      %461 = vmatprep.subr.bf16.mxu0 0
      %462 = vmatpush1.bf16.msra.mxu0 0
      %463 = vmatprep.subr.bf16.mxu0 0
      %464 = vmatpush1.bf16.msra.mxu0 0
      %465 = vmatprep.subr.bf16.mxu0 0
      %466 = vmatpush1.bf16.msra.mxu0 0
      %467 = vmatprep.mubr.bf16.mxu0 0
      %468 = vmatmul.mubr.bf16.gmra.mrb[0].mxu0 %v364
      %v469 = vpop.f32.mrb[0].mxu0
      %v470 = vadd.f32 %v386, %v469
      %v471 = vpop.f32.mrb[0].mxu0
      %v472 = vpop.f32.mrb[0].mxu0
      %v473 = vadd.f32 %v386, %v472
      %v474 = vpop.f32.mrb[0].mxu0
      %475 = vmatprep.mubr.bf16.mxu0 0
      %476 = vmatmul.mubr.bf16.gmra.mrb[0].mxu0 %v365
      %v477 = vpop.f32.mrb[0].mxu0
      %v478 = vadd.f32 %v386, %v477
      %v479 = vpop.f32.mrb[0].mxu0
      %v480 = vpop.f32.mrb[0].mxu0
      %v481 = vadd.f32 %v386, %v480
      %v482 = vpop.f32.mrb[0].mxu0
      %483 = vdwg.mxu0
      %v484 = vmax.f32 %v470, 0.0
      %v485 = vmax.f32 %v473, 0.0
      %v486 = vmax.f32 %v478, 0.0
      %v487 = vmax.f32 %v481, 0.0
      %v488 = vpack.c.bf16 %v485, %v484
      %v489 = vpack.c.bf16 %v487, %v486
      %s490 = scalar_lea.vmem %s3, 64
      %v491 = vld [vmem:[%s490] sm:$0xf]
      %v492 = vld [vmem:[%s490 + $0x4] sm:$0xf]
      %v493 = vld [vmem:[%s490 + $0x8] sm:$0xf]
      %v494 = vld [vmem:[%s490 + $0xc] sm:$0xf]
      %v495 = vld [vmem:[%s490 + $0x10] sm:$0xf]
      %v496 = vld [vmem:[%s490 + $0x14] sm:$0xf]
      %v497 = vld [vmem:[%s490 + $0x18] sm:$0xf]
      %v498 = vld [vmem:[%s490 + $0x1c] sm:$0xf]
      %v499 = vld [vmem:[%s490 + $0x20] sm:$0xf]
      %v500 = vld [vmem:[%s490 + $0x24] sm:$0xf]
      %v501 = vld [vmem:[%s490 + $0x28] sm:$0xf]
      %v502 = vld [vmem:[%s490 + $0x2c] sm:$0xf]
      %v503 = vld [vmem:[%s490 + $0x30] sm:$0xf]
      %v504 = vld [vmem:[%s490 + $0x34] sm:$0xf]
      %v505 = vld [vmem:[%s490 + $0x38] sm:$0xf]
      %v506 = vld [vmem:[%s490 + $0x3c] sm:$0xf]
      %v507 = vlaneseq
      %v508 = vshrl.u32 %v507, 7
      %v509 = vsub.s32 1, %v508
      %v510 = vrot.slane %v366, %v509
      %v527 = vunpack.c.l.b16 %v491
      %v528 = vunpack.c.l.b16 %v492
      %v529 = vunpack.c.l.b16 %v493
      %v530 = vunpack.c.l.b16 %v494
      %v531 = vunpack.c.l.b16 %v495
      %v532 = vunpack.c.l.b16 %v496
      %v533 = vunpack.c.l.b16 %v497
      %v534 = vunpack.c.l.b16 %v498
      %v535 = vunpack.c.l.b16 %v499
      %v536 = vunpack.c.l.b16 %v500
      %v537 = vunpack.c.l.b16 %v501
      %v538 = vunpack.c.l.b16 %v502
      %v539 = vunpack.c.l.b16 %v503
      %v540 = vunpack.c.l.b16 %v504
      %v541 = vunpack.c.l.b16 %v505
      %v542 = vunpack.c.l.b16 %v506
      %v543 = vpack.c.b16 %v528, %v527
      %v544 = vpack.c.b16 %v530, %v529
      %v545 = vpack.c.b16 %v532, %v531
      %v546 = vpack.c.b16 %v534, %v533
      %v547 = vpack.c.b16 %v536, %v535
      %v548 = vpack.c.b16 %v538, %v537
      %v549 = vpack.c.b16 %v540, %v539
      %v550 = vpack.c.b16 %v542, %v541
      %559 = vmatprep.subr.bf16.mxu0 0
      %560 = vmatpush1.bf16.msra.mxu0 %v543
      %561 = vmatprep.subr.bf16.mxu0 0
      %562 = vmatpush1.bf16.msra.mxu0 %v544
      %563 = vmatprep.subr.bf16.mxu0 0
      %564 = vmatpush1.bf16.msra.mxu0 %v545
      %565 = vmatprep.subr.bf16.mxu0 0
      %566 = vmatpush1.bf16.msra.mxu0 %v546
      %567 = vmatprep.subr.bf16.mxu0 0
      %568 = vmatpush1.bf16.msra.mxu0 %v547
      %569 = vmatprep.subr.bf16.mxu0 0
      %570 = vmatpush1.bf16.msra.mxu0 %v548
      %571 = vmatprep.subr.bf16.mxu0 0
      %572 = vmatpush1.bf16.msra.mxu0 %v549
      %573 = vmatprep.subr.bf16.mxu0 0
      %574 = vmatpush1.bf16.msra.mxu0 %v550
      %575 = vmatprep.subr.bf16.mxu0 0
      %576 = vmatpush1.bf16.msra.mxu0 0
      %577 = vmatprep.subr.bf16.mxu0 0
      %578 = vmatpush1.bf16.msra.mxu0 0
      %579 = vmatprep.subr.bf16.mxu0 0
      %580 = vmatpush1.bf16.msra.mxu0 0
      %581 = vmatprep.subr.bf16.mxu0 0
      %582 = vmatpush1.bf16.msra.mxu0 0
      %583 = vmatprep.subr.bf16.mxu0 0
      %584 = vmatpush1.bf16.msra.mxu0 0
      %585 = vmatprep.subr.bf16.mxu0 0
      %586 = vmatpush1.bf16.msra.mxu0 0
      %587 = vmatprep.subr.bf16.mxu0 0
      %588 = vmatpush1.bf16.msra.mxu0 0
      %589 = vmatprep.subr.bf16.mxu0 0
      %590 = vmatpush1.bf16.msra.mxu0 0
      %591 = vmatprep.mubr.bf16.mxu0 0
      %592 = vmatmul.mubr.bf16.gmra.mrb[0].mxu0 %v488
      %v593 = vpop.f32.mrb[0].mxu0
      %v594 = vadd.f32 %v510, %v593
      %v595 = vpop.f32.mrb[0].mxu0
      %v596 = vpop.f32.mrb[0].mxu0
      %v597 = vadd.f32 %v510, %v596
      %v598 = vpop.f32.mrb[0].mxu0
      %599 = vmatprep.mubr.bf16.mxu0 0
      %600 = vmatmul.mubr.bf16.gmra.mrb[0].mxu0 %v489
      %v601 = vpop.f32.mrb[0].mxu0
      %v602 = vadd.f32 %v510, %v601
      %v603 = vpop.f32.mrb[0].mxu0
      %v604 = vpop.f32.mrb[0].mxu0
      %v605 = vadd.f32 %v510, %v604
      %v606 = vpop.f32.mrb[0].mxu0
      %607 = vdwg.mxu0
      %v608 = vmax.f32 %v594, 0.0
      %v609 = vmax.f32 %v597, 0.0
      %v610 = vmax.f32 %v602, 0.0
      %v611 = vmax.f32 %v605, 0.0
      %v612 = vpack.c.bf16 %v609, %v608
      %v613 = vpack.c.bf16 %v611, %v610
      %v614 = vld [vmem:[%s5] sm:$0xf]
      %v615 = vld [vmem:[%s5 + $0x4] sm:$0xf]
      %v616 = vld [vmem:[%s5 + $0x8] sm:$0xf]
      %v617 = vld [vmem:[%s5 + $0xc] sm:$0xf]
      %v618 = vld [vmem:[%s5 + $0x10] sm:$0xf]
      %v619 = vld [vmem:[%s5 + $0x14] sm:$0xf]
      %v620 = vld [vmem:[%s5 + $0x18] sm:$0xf]
      %v621 = vld [vmem:[%s5 + $0x1c] sm:$0xf]
      %v622 = vld [vmem:[%s5 + $0x20] sm:$0xf]
      %v623 = vld [vmem:[%s5 + $0x24] sm:$0xf]
      %v624 = vld [vmem:[%s5 + $0x28] sm:$0xf]
      %v625 = vld [vmem:[%s5 + $0x2c] sm:$0xf]
      %v626 = vld [vmem:[%s5 + $0x30] sm:$0xf]
      %v627 = vld [vmem:[%s5 + $0x34] sm:$0xf]
      %v628 = vld [vmem:[%s5 + $0x38] sm:$0xf]
      %v629 = vld [vmem:[%s5 + $0x3c] sm:$0xf]
      %v630 = vld [vmem:[%s6] sm:$0x1]
      %v632 = vlaneseq
      %v633 = vshrl.u32 %v632, 7
      %v634 = vsub.s32 0, %v633
      %v635 = vrot.slane %v630, %v634
      %v653 = vunpack.c.l.b16 %v614
      %v654 = vunpack.c.l.b16 %v615
      %v655 = vunpack.c.l.b16 %v616
      %v656 = vunpack.c.l.b16 %v617
      %v657 = vunpack.c.l.b16 %v618
      %v658 = vunpack.c.l.b16 %v619
      %v659 = vunpack.c.l.b16 %v620
      %v660 = vunpack.c.l.b16 %v621
      %v661 = vunpack.c.l.b16 %v622
      %v662 = vunpack.c.l.b16 %v623
      %v663 = vunpack.c.l.b16 %v624
      %v664 = vunpack.c.l.b16 %v625
      %v665 = vunpack.c.l.b16 %v626
      %v666 = vunpack.c.l.b16 %v627
      %v667 = vunpack.c.l.b16 %v628
      %v668 = vunpack.c.l.b16 %v629
      %v669 = vpack.c.b16 %v654, %v653
      %v670 = vpack.c.b16 %v656, %v655
      %v671 = vpack.c.b16 %v658, %v657
      %v672 = vpack.c.b16 %v660, %v659
      %v673 = vpack.c.b16 %v662, %v661
      %v674 = vpack.c.b16 %v664, %v663
      %v675 = vpack.c.b16 %v666, %v665
      %v676 = vpack.c.b16 %v668, %v667
      %685 = vmatprep.subr.bf16.mxu0 0
      %686 = vmatpush1.bf16.msra.mxu0 %v669
      %687 = vmatprep.subr.bf16.mxu0 0
      %688 = vmatpush1.bf16.msra.mxu0 %v670
      %689 = vmatprep.subr.bf16.mxu0 0
      %690 = vmatpush1.bf16.msra.mxu0 %v671
      %691 = vmatprep.subr.bf16.mxu0 0
      %692 = vmatpush1.bf16.msra.mxu0 %v672
      %693 = vmatprep.subr.bf16.mxu0 0
      %694 = vmatpush1.bf16.msra.mxu0 %v673
      %695 = vmatprep.subr.bf16.mxu0 0
      %696 = vmatpush1.bf16.msra.mxu0 %v674
      %697 = vmatprep.subr.bf16.mxu0 0
      %698 = vmatpush1.bf16.msra.mxu0 %v675
      %699 = vmatprep.subr.bf16.mxu0 0
      %700 = vmatpush1.bf16.msra.mxu0 %v676
      %701 = vmatprep.subr.bf16.mxu0 0
      %702 = vmatpush1.bf16.msra.mxu0 0
      %703 = vmatprep.subr.bf16.mxu0 0
      %704 = vmatpush1.bf16.msra.mxu0 0
      %705 = vmatprep.subr.bf16.mxu0 0
      %706 = vmatpush1.bf16.msra.mxu0 0
      %707 = vmatprep.subr.bf16.mxu0 0
      %708 = vmatpush1.bf16.msra.mxu0 0
      %709 = vmatprep.subr.bf16.mxu0 0
      %710 = vmatpush1.bf16.msra.mxu0 0
      %711 = vmatprep.subr.bf16.mxu0 0
      %712 = vmatpush1.bf16.msra.mxu0 0
      %713 = vmatprep.subr.bf16.mxu0 0
      %714 = vmatpush1.bf16.msra.mxu0 0
      %715 = vmatprep.subr.bf16.mxu0 0
      %716 = vmatpush1.bf16.msra.mxu0 0
      %717 = vmatprep.mubr.bf16.mxu0 0
      %718 = vmatmul.mubr.bf16.gmra.mrb[0].mxu0 %v612
      %v719 = vpop.f32.mrb[0].mxu0
      %v720 = vadd.f32 %v635, %v719
      %v721 = vpop.f32.mrb[0].mxu0
      %v722 = vpop.f32.mrb[0].mxu0
      %v723 = vadd.f32 %v635, %v722
      %v724 = vpop.f32.mrb[0].mxu0
      %725 = vmatprep.mubr.bf16.mxu0 0
      %726 = vmatmul.mubr.bf16.gmra.mrb[0].mxu0 %v613
      %v727 = vpop.f32.mrb[0].mxu0
      %v728 = vadd.f32 %v635, %v727
      %v729 = vpop.f32.mrb[0].mxu0
      %v730 = vpop.f32.mrb[0].mxu0
      %v731 = vadd.f32 %v635, %v730
      %v732 = vpop.f32.mrb[0].mxu0
      %733 = vdwg.mxu0
      %vm734 = vcmask 31744
      %735 = vst.msk [vmem:[%s280] sm:$0xff] %vm734, %v720
      %736 = vst.msk [vmem:[%s280 + $0x8] sm:$0xff] %vm734, %v723
      %737 = vst.msk [vmem:[%s280 + $0x10] sm:$0xff] %vm734, %v728
      %738 = vst.msk [vmem:[%s280 + $0x18] sm:$0xff] %vm734, %v731
      %s739 = smul.u32 4, %s18
      %p740 = scmp.lt.s32.totalorder %s739, 7
      %s741 = scalar_select %p740, %s739, 7
      %s742 = smul.addr %s741, 8
      %s743 = scalar_lea.vmem %s7, %s742
      // Predicated region
      $region49: #{tpu_custom_call.1} parent=47 // pred_check
        %p744 = pneg %p188
      $region50: #{tpu_custom_call.1} parent=47 // pred_check_branch
        %746 = sbr.rel (%p744) target = $region52
      $region51: #{tpu_custom_call.1} parent=47 // pred_region
        %s747 = smul.u32 4, %s18
      $region52: #{tpu_custom_call.1} parent=47 // pred_fallthru
        _
    $region48: #{tpu_custom_call.1} parent=5 // pred_fallthru
      _
    %p748 = scmp.le.s32.totalorder 2, %s13
    // Predicated region
    $region53: #{tpu_custom_call.1} parent=5 // pred_check
      %p749 = pneg %p748
    $region54: #{tpu_custom_call.1} parent=5 // pred_check_branch
      %751 = sbr.rel (%p749) target = $region56
    $region55: #{tpu_custom_call.1} parent=5 // pred_region
      %s752 = ssub.s32 %s13, 2
      // Predicated region
      $region57: #{tpu_custom_call.1} parent=55 // pred_check
        %p753 = pneg %p194
      $region58: #{tpu_custom_call.1} parent=55 // pred_check_branch
        %755 = sbr.rel (%p753) target = $region60
      $region59: #{tpu_custom_call.1} parent=55 // pred_region
        %s756 = smul.u32 4, %s19
        %p757 = scmp.lt.s32.totalorder %s756, 7
        %s758 = scalar_select %p757, %s756, 7
        %s759 = smul.addr %s758, 8
        %s760 = scalar_lea.vmem %s7, %s759
      $region60: #{tpu_custom_call.1} parent=55 // pred_fallthru
        _
    $region56: #{tpu_custom_call.1} parent=5 // pred_fallthru
      _
  $region6: #{tpu_custom_call.1} parent=0 // loop_footer
    %s17 = sadd.s32 1, %s13
  $region7: #{tpu_custom_call.1} parent=0 // loop_footer_branch
    %12 = sbr.rel target = $region3
  $region8: #{tpu_custom_call.1} parent=0 // loop_exit
    _

// kernel: tpu_custom_call.1
$region0: #{tpu_custom_call.1}
  #allocation0 [shape = 'u32[]', space=smem, size = 0x4, offset = 0x4, fixed_abs, tag = 'smem constant byte address 0x4 - core index']
  #allocation1 [shape = 'u32[144,128]{1,0:T(1,128)}', space=vmem, size = 0x12000, scoped, tag = 'internal scratch']
  %s0 = inlined_call_operand.vmem [shape: f32[64,16], index: 0, kind: input, shape index: {}]
  %s1 = inlined_call_operand.vmem [shape: bf16[16,128], index: 1, kind: input, shape index: {}]
  %s2 = inlined_call_operand.vmem [shape: f32[1,128], index: 2, kind: input, shape index: {}]
  %s3 = inlined_call_operand.vmem [shape: bf16[2,128,128], index: 3, kind: input, shape index: {}]
  %s4 = inlined_call_operand.vmem [shape: f32[2,128], index: 4, kind: input, shape index: {}]
  %s5 = inlined_call_operand.vmem [shape: bf16[128,4], index: 5, kind: input, shape index: {}]
  %s6 = inlined_call_operand.vmem [shape: f32[1,4], index: 6, kind: input, shape index: {}]
  %s7 = inlined_call_operand.vmem [shape: f32[64,4], index: 7, kind: output, shape index: {}]
  %s8 = sld [smem:[#allocation0]]
  $region61: #{tpu_custom_call.1} parent=0
    _
  %s10 = ssub.s32 1, %s8
  %s11 = scalar_select 0, %s10, %s8
  loop: start=0, step=1, limit=4
  $region2: #{tpu_custom_call.1} parent=0 // loop_pre_header
    _
  $region3: #{tpu_custom_call.1} parent=0 // loop_header
    %s13 = sphi 0, %s17
    %p14 = scmp.ge.s32.totalorder %s13, 4
    %s23 = sphi 0, %s25
    %s26 = sphi 0, %s23
    %s27 = sphi 0, %s26
    %s43 = sphi 0, %s27
    %s47 = sphi 0, %s47
    %s49 = sphi 0, %s47
    %s50 = sphi 0, %s49
    %s64 = sphi 0, %s50
    %s68 = sphi 0, %s68
    %s70 = sphi 0, %s68
    %s71 = sphi 0, %s70
    %s85 = sphi 0, %s71
    %s89 = sphi 0, %s89
    %s91 = sphi 0, %s89
    %s92 = sphi 0, %s91
    %s106 = sphi 0, %s92
    %s110 = sphi 0, %s110
    %s112 = sphi 0, %s110
    %s113 = sphi 0, %s112
    %s127 = sphi 0, %s113
    %s131 = sphi 0, %s131
    %s133 = sphi 0, %s131
    %s134 = sphi 0, %s133
    %s148 = sphi 0, %s134
    %s152 = sphi 0, %s152
    %s154 = sphi 0, %s152
    %s155 = sphi 0, %s154
    %s169 = sphi 0, %s155
    %s175 = sphi 0, %s177
    %s178 = sphi 0, %s175
    %s179 = sphi 0, %s178
    %s195 = sphi 0, %s179
  $region4: #{tpu_custom_call.1} parent=0 // loop_header_branch
    %16 = sbr.rel (%p14) target = $region8
  $region5: #{tpu_custom_call.1} parent=0 // loop_body
    %s18 = ssub.s32 %s13, 1
    %s19 = ssub.s32 %s13, 2
    %s20 = sadd.s32 %s13, 1
    %s21 = ssub.s32 %s13, %s20
    %p22 = scmp.eq.s32.totalorder %s21, 0
    %s24 = sadd.s32 %s23, 1
    %s25 = scalar_select %p22, %s23, %s24
    %p28 = pneg %p22
    %p29 = scmp.eq.s32.totalorder %s13, 1
    %p30 = por %p28, %p29
    %p31 = scmp.ne.s32.totalorder %s23, %s26
    %p32 = scmp.eq.s32.totalorder %s13, 0
    %p33 = por %p31, %p32
    %p34 = scmp.ne.s32.totalorder %s23, %s26
    %p35 = scmp.eq.s32.totalorder %s18, 1
    %p36 = por %p34, %p35
    %p37 = scmp.ne.s32.totalorder %s26, %s27
    %p38 = scmp.eq.s32.totalorder %s18, 0
    %p39 = por %p37, %p38
    %p40 = scmp.ne.s32.totalorder %s26, %s27
    %p41 = scmp.eq.s32.totalorder %s19, 1
    %p42 = por %p40, %p41
    %p44 = scmp.ne.s32.totalorder %s27, %s43
    %p45 = scmp.eq.s32.totalorder %s19, 0
    %p46 = por %p44, %p45
    %s48 = sadd.s32 %s47, 1
    %p51 = scmp.eq.s32.totalorder %s13, 1
    %p52 = scmp.ne.s32.totalorder %s47, %s49
    %p53 = scmp.eq.s32.totalorder %s13, 0
    %p54 = por %p52, %p53
    %p55 = scmp.ne.s32.totalorder %s47, %s49
    %p56 = scmp.eq.s32.totalorder %s18, 1
    %p57 = por %p55, %p56
    %p58 = scmp.ne.s32.totalorder %s49, %s50
    %p59 = scmp.eq.s32.totalorder %s18, 0
    %p60 = por %p58, %p59
    %p61 = scmp.ne.s32.totalorder %s49, %s50
    %p62 = scmp.eq.s32.totalorder %s19, 1
    %p63 = por %p61, %p62
    %p65 = scmp.ne.s32.totalorder %s50, %s64
    %p66 = scmp.eq.s32.totalorder %s19, 0
    %p67 = por %p65, %p66
    %s69 = sadd.s32 %s68, 1
    %p72 = scmp.eq.s32.totalorder %s13, 1
    %p73 = scmp.ne.s32.totalorder %s68, %s70
    %p74 = scmp.eq.s32.totalorder %s13, 0
    %p75 = por %p73, %p74
    %p76 = scmp.ne.s32.totalorder %s68, %s70
    %p77 = scmp.eq.s32.totalorder %s18, 1
    %p78 = por %p76, %p77
    %p79 = scmp.ne.s32.totalorder %s70, %s71
    %p80 = scmp.eq.s32.totalorder %s18, 0
    %p81 = por %p79, %p80
    %p82 = scmp.ne.s32.totalorder %s70, %s71
    %p83 = scmp.eq.s32.totalorder %s19, 1
    %p84 = por %p82, %p83
    %p86 = scmp.ne.s32.totalorder %s71, %s85
    %p87 = scmp.eq.s32.totalorder %s19, 0
    %p88 = por %p86, %p87
    %s90 = sadd.s32 %s89, 1
    %p93 = scmp.eq.s32.totalorder %s13, 1
    %p94 = scmp.ne.s32.totalorder %s89, %s91
    %p95 = scmp.eq.s32.totalorder %s13, 0
    %p96 = por %p94, %p95
    %p97 = scmp.ne.s32.totalorder %s89, %s91
    %p98 = scmp.eq.s32.totalorder %s18, 1
    %p99 = por %p97, %p98
    %p100 = scmp.ne.s32.totalorder %s91, %s92
    %p101 = scmp.eq.s32.totalorder %s18, 0
    %p102 = por %p100, %p101
    %p103 = scmp.ne.s32.totalorder %s91, %s92
    %p104 = scmp.eq.s32.totalorder %s19, 1
    %p105 = por %p103, %p104
    %p107 = scmp.ne.s32.totalorder %s92, %s106
    %p108 = scmp.eq.s32.totalorder %s19, 0
    %p109 = por %p107, %p108
    %s111 = sadd.s32 %s110, 1
    %p114 = scmp.eq.s32.totalorder %s13, 1
    %p115 = scmp.ne.s32.totalorder %s110, %s112
    %p116 = scmp.eq.s32.totalorder %s13, 0
    %p117 = por %p115, %p116
    %p118 = scmp.ne.s32.totalorder %s110, %s112
    %p119 = scmp.eq.s32.totalorder %s18, 1
    %p120 = por %p118, %p119
    %p121 = scmp.ne.s32.totalorder %s112, %s113
    %p122 = scmp.eq.s32.totalorder %s18, 0
    %p123 = por %p121, %p122
    %p124 = scmp.ne.s32.totalorder %s112, %s113
    %p125 = scmp.eq.s32.totalorder %s19, 1
    %p126 = por %p124, %p125
    %p128 = scmp.ne.s32.totalorder %s113, %s127
    %p129 = scmp.eq.s32.totalorder %s19, 0
    %p130 = por %p128, %p129
    %s132 = sadd.s32 %s131, 1
    %p135 = scmp.eq.s32.totalorder %s13, 1
    %p136 = scmp.ne.s32.totalorder %s131, %s133
    %p137 = scmp.eq.s32.totalorder %s13, 0
    %p138 = por %p136, %p137
    %p139 = scmp.ne.s32.totalorder %s131, %s133
    %p140 = scmp.eq.s32.totalorder %s18, 1
    %p141 = por %p139, %p140
    %p142 = scmp.ne.s32.totalorder %s133, %s134
    %p143 = scmp.eq.s32.totalorder %s18, 0
    %p144 = por %p142, %p143
    %p145 = scmp.ne.s32.totalorder %s133, %s134
    %p146 = scmp.eq.s32.totalorder %s19, 1
    %p147 = por %p145, %p146
    %p149 = scmp.ne.s32.totalorder %s134, %s148
    %p150 = scmp.eq.s32.totalorder %s19, 0
    %p151 = por %p149, %p150
    %s153 = sadd.s32 %s152, 1
    %p156 = scmp.eq.s32.totalorder %s13, 1
    %p157 = scmp.ne.s32.totalorder %s152, %s154
    %p158 = scmp.eq.s32.totalorder %s13, 0
    %p159 = por %p157, %p158
    %p160 = scmp.ne.s32.totalorder %s152, %s154
    %p161 = scmp.eq.s32.totalorder %s18, 1
    %p162 = por %p160, %p161
    %p163 = scmp.ne.s32.totalorder %s154, %s155
    %p164 = scmp.eq.s32.totalorder %s18, 0
    %p165 = por %p163, %p164
    %p166 = scmp.ne.s32.totalorder %s154, %s155
    %p167 = scmp.eq.s32.totalorder %s19, 1
    %p168 = por %p166, %p167
    %p170 = scmp.ne.s32.totalorder %s155, %s169
    %p171 = scmp.eq.s32.totalorder %s19, 0
    %p172 = por %p170, %p171
    %s173 = ssub.s32 %s13, %s20
    %p174 = scmp.eq.s32.totalorder %s173, 0
    %s176 = sadd.s32 %s175, 1
    %s177 = scalar_select %p174, %s175, %s176
    %p180 = pneg %p174
    %p181 = scmp.eq.s32.totalorder %s13, 1
    %p182 = por %p180, %p181
    %p183 = scmp.ne.s32.totalorder %s175, %s178
    %p184 = scmp.eq.s32.totalorder %s13, 0
    %p185 = por %p183, %p184
    %p186 = scmp.ne.s32.totalorder %s175, %s178
    %p187 = scmp.eq.s32.totalorder %s18, 1
    %p188 = por %p186, %p187
    %p189 = scmp.ne.s32.totalorder %s178, %s179
    %p190 = scmp.eq.s32.totalorder %s18, 0
    %p191 = por %p189, %p190
    %p192 = scmp.ne.s32.totalorder %s178, %s179
    %p193 = scmp.eq.s32.totalorder %s19, 1
    %p194 = por %p192, %p193
    %p196 = scmp.ne.s32.totalorder %s179, %s195
    %p197 = scmp.eq.s32.totalorder %s19, 0
    %p198 = por %p196, %p197
    %p199 = scmp.le.s32.totalorder 1, %s13
    %p200 = scmp.lt.s32.totalorder %s13, 3
    %p201 = pnand %p199, %p200
    %p202 = pneg %p201
    // Predicated region
    $region9: #{tpu_custom_call.1} parent=5 // pred_check
      _
    $region10: #{tpu_custom_call.1} parent=5 // pred_check_branch
      %204 = sbr.rel (%p201) target = $region12
    $region11: #{tpu_custom_call.1} parent=5 // pred_region
      %s205 = ssub.s32 %s13, 1
      // Predicated region
      $region13: #{tpu_custom_call.1} parent=11 // pred_check
        %p206 = pneg %p60
      $region14: #{tpu_custom_call.1} parent=11 // pred_check_branch
        %208 = sbr.rel (%p206) target = $region16
      $region15: #{tpu_custom_call.1} parent=11 // pred_region
        _
      $region16: #{tpu_custom_call.1} parent=11 // pred_fallthru
        _
      // Predicated region
      $region17: #{tpu_custom_call.1} parent=11 // pred_check
        %p209 = pneg %p81
      $region18: #{tpu_custom_call.1} parent=11 // pred_check_branch
        %211 = sbr.rel (%p209) target = $region20
      $region19: #{tpu_custom_call.1} parent=11 // pred_region
        _
      $region20: #{tpu_custom_call.1} parent=11 // pred_fallthru
        _
      // Predicated region
      $region21: #{tpu_custom_call.1} parent=11 // pred_check
        %p212 = pneg %p102
      $region22: #{tpu_custom_call.1} parent=11 // pred_check_branch
        %214 = sbr.rel (%p212) target = $region24
      $region23: #{tpu_custom_call.1} parent=11 // pred_region
        _
      $region24: #{tpu_custom_call.1} parent=11 // pred_fallthru
        _
      // Predicated region
      $region25: #{tpu_custom_call.1} parent=11 // pred_check
        %p215 = pneg %p123
      $region26: #{tpu_custom_call.1} parent=11 // pred_check_branch
        %217 = sbr.rel (%p215) target = $region28
      $region27: #{tpu_custom_call.1} parent=11 // pred_region
        _
      $region28: #{tpu_custom_call.1} parent=11 // pred_fallthru
        _
      // Predicated region
      $region29: #{tpu_custom_call.1} parent=11 // pred_check
        %p218 = pneg %p144
      $region30: #{tpu_custom_call.1} parent=11 // pred_check_branch
        %220 = sbr.rel (%p218) target = $region32
      $region31: #{tpu_custom_call.1} parent=11 // pred_region
        _
      $region32: #{tpu_custom_call.1} parent=11 // pred_fallthru
        _
      // Predicated region
      $region33: #{tpu_custom_call.1} parent=11 // pred_check
        %p221 = pneg %p165
      $region34: #{tpu_custom_call.1} parent=11 // pred_check_branch
        %223 = sbr.rel (%p221) target = $region36
      $region35: #{tpu_custom_call.1} parent=11 // pred_region
        _
      $region36: #{tpu_custom_call.1} parent=11 // pred_fallthru
        _
    $region12: #{tpu_custom_call.1} parent=5 // pred_fallthru
      _
    %p224 = scmp.lt.s32.totalorder %s13, 2
    // Predicated region
    $region37: #{tpu_custom_call.1} parent=5 // pred_check
      %p225 = pneg %p224
    $region38: #{tpu_custom_call.1} parent=5 // pred_check_branch
      %227 = sbr.rel (%p225) target = $region40
    $region39: #{tpu_custom_call.1} parent=5 // pred_region
      // Predicated region
      $region41: #{tpu_custom_call.1} parent=39 // pred_check
        %p228 = pneg %p33
      $region42: #{tpu_custom_call.1} parent=39 // pred_check_branch
        %230 = sbr.rel (%p228) target = $region44
      $region43: #{tpu_custom_call.1} parent=39 // pred_region
        %s231 = smul.u32 4, %s13
        %p232 = scmp.lt.s32.totalorder %s231, 7
        %s233 = scalar_select %p232, %s231, 7
        %s234 = smul.addr %s233, 8
        %s235 = scalar_lea.vmem %s0, %s234
        %s236 = smul.u32 4, %s13
      $region44: #{tpu_custom_call.1} parent=39 // pred_fallthru
        _
    $region40: #{tpu_custom_call.1} parent=5 // pred_fallthru
      _
    %p237 = scmp.le.s32.totalorder 1, %s13
    %p238 = scmp.lt.s32.totalorder %s13, 3
    %p239 = pnand %p237, %p238
    %p240 = pneg %p239
    // Predicated region
    $region45: #{tpu_custom_call.1} parent=5 // pred_check
      _
    $region46: #{tpu_custom_call.1} parent=5 // pred_check_branch
      %242 = sbr.rel (%p239) target = $region48
    $region47: #{tpu_custom_call.1} parent=5 // pred_region
      %s243 = ssub.s32 %s13, 1
      %s244 = smul.u32 4, %s18
      %p245 = scmp.lt.s32.totalorder %s244, 7
      %s246 = scalar_select %p245, %s244, 7
      %s247 = smul.addr %s246, 8
      %s248 = scalar_lea.vmem %s0, %s247
      %p249 = pneg %p39
      %p250 = pneg %p36
      %p251 = pneg %p60
      %p252 = pneg %p57
      %p253 = pneg %p81
      %p254 = pneg %p78
      %p255 = pneg %p102
      %p256 = pneg %p99
      %p257 = pneg %p123
      %p258 = pneg %p120
      %p259 = pneg %p144
      %p260 = pneg %p141
      %p261 = pneg %p165
      %p262 = pneg %p162
      %p263 = pneg %p191
      %p264 = pneg %p188
      %s265 = smul.u32 4, %s18
      %p266 = scmp.lt.s32.totalorder %s265, 7
      %s267 = scalar_select %p266, %s265, 7
      %s268 = smul.addr %s267, 8
      %s269 = scalar_lea.vmem %s7, %s268
      %s270 = smul.u32 4, %s18
      %p271 = scmp.lt.s32.totalorder %s270, 7
      %s272 = scalar_select %p271, %s270, 7
      %s273 = smul.addr %s272, 8
      %s274 = scalar_lea.vmem %s0, %s273
      %s275 = smul.u32 4, %s18
      %s276 = smul.u32 4, %s18
      %p277 = scmp.lt.s32.totalorder %s276, 7
      %s278 = scalar_select %p277, %s276, 7
      %s279 = smul.addr %s278, 8
      %s280 = scalar_lea.vmem %s7, %s279
      %s281 = smul.u32 4, %s18
      %v283 = vld [vmem:[%s274] sm:$0xff]
      %v284 = vld [vmem:[%s274 + $0x8] sm:$0xff]
      %v285 = vld [vmem:[%s274 + $0x10] sm:$0xff]
      %v286 = vld [vmem:[%s274 + $0x18] sm:$0xff]
      %v287 = vpack.c.bf16 %v284, %v283
      %v288 = vpack.c.bf16 %v286, %v285
      %v289 = vld [vmem:[%s1] sm:$0xf]
      %v290 = vld [vmem:[%s1 + $0x4] sm:$0xf]
      %v291 = vld [vmem:[%s2] sm:$0x1]
      %v293 = vlaneseq
      %v294 = vshrl.u32 %v293, 7
      %v295 = vsub.s32 0, %v294
      %v296 = vrot.slane %v291, %v295
      %v300 = vunpack.c.l.b16 %v289
      %v301 = vunpack.c.l.b16 %v290
      %v302 = vpack.c.b16 %v301, %v300
      %vm304 = vcmask 130048
      %v306 = vsel %vm304, %v287, 0
      %v309 = vsel %vm304, %v288, 0
      %311 = vmatprep.subr.bf16.mxu0 0
      %312 = vmatpush1.bf16.msra.mxu0 %v302
      %313 = vmatprep.subr.bf16.mxu0 0
      %314 = vmatpush1.bf16.msra.mxu0 0
      %315 = vmatprep.subr.bf16.mxu0 0
      %316 = vmatpush1.bf16.msra.mxu0 0
      %317 = vmatprep.subr.bf16.mxu0 0
      %318 = vmatpush1.bf16.msra.mxu0 0
      %319 = vmatprep.subr.bf16.mxu0 0
      %320 = vmatpush1.bf16.msra.mxu0 0
      %321 = vmatprep.subr.bf16.mxu0 0
      %322 = vmatpush1.bf16.msra.mxu0 0
      %323 = vmatprep.subr.bf16.mxu0 0
      %324 = vmatpush1.bf16.msra.mxu0 0
      %325 = vmatprep.subr.bf16.mxu0 0
      %326 = vmatpush1.bf16.msra.mxu0 0
      %327 = vmatprep.subr.bf16.mxu0 0
      %328 = vmatpush1.bf16.msra.mxu0 0
      %329 = vmatprep.subr.bf16.mxu0 0
      %330 = vmatpush1.bf16.msra.mxu0 0
      %331 = vmatprep.subr.bf16.mxu0 0
      %332 = vmatpush1.bf16.msra.mxu0 0
      %333 = vmatprep.subr.bf16.mxu0 0
      %334 = vmatpush1.bf16.msra.mxu0 0
      %335 = vmatprep.subr.bf16.mxu0 0
      %336 = vmatpush1.bf16.msra.mxu0 0
      %337 = vmatprep.subr.bf16.mxu0 0
      %338 = vmatpush1.bf16.msra.mxu0 0
      %339 = vmatprep.subr.bf16.mxu0 0
      %340 = vmatpush1.bf16.msra.mxu0 0
      %341 = vmatprep.subr.bf16.mxu0 0
      %342 = vmatpush1.bf16.msra.mxu0 0
      %343 = vmatprep.mubr.bf16.mxu0 0
      %344 = vmatmul.mubr.bf16.gmra.mrb[0].mxu0 %v306
      %v345 = vpop.f32.mrb[0].mxu0
      %v346 = vadd.f32 %v296, %v345
      %v347 = vpop.f32.mrb[0].mxu0
      %v348 = vpop.f32.mrb[0].mxu0
      %v349 = vadd.f32 %v296, %v348
      %v350 = vpop.f32.mrb[0].mxu0
      %351 = vmatprep.mubr.bf16.mxu0 0
      %352 = vmatmul.mubr.bf16.gmra.mrb[0].mxu0 %v309
      %v353 = vpop.f32.mrb[0].mxu0
      %v354 = vadd.f32 %v296, %v353
      %v355 = vpop.f32.mrb[0].mxu0
      %v356 = vpop.f32.mrb[0].mxu0
      %v357 = vadd.f32 %v296, %v356
      %v358 = vpop.f32.mrb[0].mxu0
      %359 = vdwg.mxu0
      %v360 = vmax.f32 %v346, 0.0
      %v361 = vmax.f32 %v349, 0.0
      %v362 = vmax.f32 %v354, 0.0
      %v363 = vmax.f32 %v357, 0.0
      %v364 = vpack.c.bf16 %v361, %v360
      %v365 = vpack.c.bf16 %v363, %v362
      %v366 = vld [vmem:[%s4] sm:$0x3]
      %v367 = vld [vmem:[%s3] sm:$0xf]
      %v368 = vld [vmem:[%s3 + $0x4] sm:$0xf]
      %v369 = vld [vmem:[%s3 + $0x8] sm:$0xf]
      %v370 = vld [vmem:[%s3 + $0xc] sm:$0xf]
      %v371 = vld [vmem:[%s3 + $0x10] sm:$0xf]
      %v372 = vld [vmem:[%s3 + $0x14] sm:$0xf]
      %v373 = vld [vmem:[%s3 + $0x18] sm:$0xf]
      %v374 = vld [vmem:[%s3 + $0x1c] sm:$0xf]
      %v375 = vld [vmem:[%s3 + $0x20] sm:$0xf]
      %v376 = vld [vmem:[%s3 + $0x24] sm:$0xf]
      %v377 = vld [vmem:[%s3 + $0x28] sm:$0xf]
      %v378 = vld [vmem:[%s3 + $0x2c] sm:$0xf]
      %v379 = vld [vmem:[%s3 + $0x30] sm:$0xf]
      %v380 = vld [vmem:[%s3 + $0x34] sm:$0xf]
      %v381 = vld [vmem:[%s3 + $0x38] sm:$0xf]
      %v382 = vld [vmem:[%s3 + $0x3c] sm:$0xf]
      %v383 = vlaneseq
      %v384 = vshrl.u32 %v383, 7
      %v385 = vsub.s32 0, %v384
      %v386 = vrot.slane %v366, %v385
      %v403 = vunpack.c.l.b16 %v367
      %v404 = vunpack.c.l.b16 %v368
      %v405 = vunpack.c.l.b16 %v369
      %v406 = vunpack.c.l.b16 %v370
      %v407 = vunpack.c.l.b16 %v371
      %v408 = vunpack.c.l.b16 %v372
      %v409 = vunpack.c.l.b16 %v373
      %v410 = vunpack.c.l.b16 %v374
      %v411 = vunpack.c.l.b16 %v375
      %v412 = vunpack.c.l.b16 %v376
      %v413 = vunpack.c.l.b16 %v377
      %v414 = vunpack.c.l.b16 %v378
      %v415 = vunpack.c.l.b16 %v379
      %v416 = vunpack.c.l.b16 %v380
      %v417 = vunpack.c.l.b16 %v381
      %v418 = vunpack.c.l.b16 %v382
      %v419 = vpack.c.b16 %v404, %v403
      %v420 = vpack.c.b16 %v406, %v405
      %v421 = vpack.c.b16 %v408, %v407
      %v422 = vpack.c.b16 %v410, %v409
      %v423 = vpack.c.b16 %v412, %v411
      %v424 = vpack.c.b16 %v414, %v413
      %v425 = vpack.c.b16 %v416, %v415
      %v426 = vpack.c.b16 %v418, %v417
      %435 = vmatprep.subr.bf16.mxu0 0
      %436 = vmatpush1.bf16.msra.mxu0 %v419
      %437 = vmatprep.subr.bf16.mxu0 0
      %438 = vmatpush1.bf16.msra.mxu0 %v420
      %439 = vmatprep.subr.bf16.mxu0 0
      %440 = vmatpush1.bf16.msra.mxu0 %v421
      %441 = vmatprep.subr.bf16.mxu0 0
      %442 = vmatpush1.bf16.msra.mxu0 %v422
      %443 = vmatprep.subr.bf16.mxu0 0
      %444 = vmatpush1.bf16.msra.mxu0 %v423
      %445 = vmatprep.subr.bf16.mxu0 0
      %446 = vmatpush1.bf16.msra.mxu0 %v424
      %447 = vmatprep.subr.bf16.mxu0 0
      %448 = vmatpush1.bf16.msra.mxu0 %v425
      %449 = vmatprep.subr.bf16.mxu0 0
      %450 = vmatpush1.bf16.msra.mxu0 %v426
      %451 = vmatprep.subr.bf16.mxu0 0
      %452 = vmatpush1.bf16.msra.mxu0 0
      %453 = vmatprep.subr.bf16.mxu0 0
      %454 = vmatpush1.bf16.msra.mxu0 0
      %455 = vmatprep.subr.bf16.mxu0 0
      %456 = vmatpush1.bf16.msra.mxu0 0
      %457 = vmatprep.subr.bf16.mxu0 0
      %458 = vmatpush1.bf16.msra.mxu0 0
      %459 = vmatprep.subr.bf16.mxu0 0
      %460 = vmatpush1.bf16.msra.mxu0 0
      %461 = vmatprep.subr.bf16.mxu0 0
      %462 = vmatpush1.bf16.msra.mxu0 0
      %463 = vmatprep.subr.bf16.mxu0 0
      %464 = vmatpush1.bf16.msra.mxu0 0
      %465 = vmatprep.subr.bf16.mxu0 0
      %466 = vmatpush1.bf16.msra.mxu0 0
      %467 = vmatprep.mubr.bf16.mxu0 0
      %468 = vmatmul.mubr.bf16.gmra.mrb[0].mxu0 %v364
      %v469 = vpop.f32.mrb[0].mxu0
      %v470 = vadd.f32 %v386, %v469
      %v471 = vpop.f32.mrb[0].mxu0
      %v472 = vpop.f32.mrb[0].mxu0
      %v473 = vadd.f32 %v386, %v472
      %v474 = vpop.f32.mrb[0].mxu0
      %475 = vmatprep.mubr.bf16.mxu0 0
      %476 = vmatmul.mubr.bf16.gmra.mrb[0].mxu0 %v365
      %v477 = vpop.f32.mrb[0].mxu0
      %v478 = vadd.f32 %v386, %v477
      %v479 = vpop.f32.mrb[0].mxu0
      %v480 = vpop.f32.mrb[0].mxu0
      %v481 = vadd.f32 %v386, %v480
      %v482 = vpop.f32.mrb[0].mxu0
      %483 = vdwg.mxu0
      %v484 = vmax.f32 %v470, 0.0
      %v485 = vmax.f32 %v473, 0.0
      %v486 = vmax.f32 %v478, 0.0
      %v487 = vmax.f32 %v481, 0.0
      %v488 = vpack.c.bf16 %v485, %v484
      %v489 = vpack.c.bf16 %v487, %v486
      %s490 = scalar_lea.vmem %s3, 64
      %v491 = vld [vmem:[%s490] sm:$0xf]
      %v492 = vld [vmem:[%s490 + $0x4] sm:$0xf]
      %v493 = vld [vmem:[%s490 + $0x8] sm:$0xf]
      %v494 = vld [vmem:[%s490 + $0xc] sm:$0xf]
      %v495 = vld [vmem:[%s490 + $0x10] sm:$0xf]
      %v496 = vld [vmem:[%s490 + $0x14] sm:$0xf]
      %v497 = vld [vmem:[%s490 + $0x18] sm:$0xf]
      %v498 = vld [vmem:[%s490 + $0x1c] sm:$0xf]
      %v499 = vld [vmem:[%s490 + $0x20] sm:$0xf]
      %v500 = vld [vmem:[%s490 + $0x24] sm:$0xf]
      %v501 = vld [vmem:[%s490 + $0x28] sm:$0xf]
      %v502 = vld [vmem:[%s490 + $0x2c] sm:$0xf]
      %v503 = vld [vmem:[%s490 + $0x30] sm:$0xf]
      %v504 = vld [vmem:[%s490 + $0x34] sm:$0xf]
      %v505 = vld [vmem:[%s490 + $0x38] sm:$0xf]
      %v506 = vld [vmem:[%s490 + $0x3c] sm:$0xf]
      %v507 = vlaneseq
      %v508 = vshrl.u32 %v507, 7
      %v509 = vsub.s32 1, %v508
      %v510 = vrot.slane %v366, %v509
      %v527 = vunpack.c.l.b16 %v491
      %v528 = vunpack.c.l.b16 %v492
      %v529 = vunpack.c.l.b16 %v493
      %v530 = vunpack.c.l.b16 %v494
      %v531 = vunpack.c.l.b16 %v495
      %v532 = vunpack.c.l.b16 %v496
      %v533 = vunpack.c.l.b16 %v497
      %v534 = vunpack.c.l.b16 %v498
      %v535 = vunpack.c.l.b16 %v499
      %v536 = vunpack.c.l.b16 %v500
      %v537 = vunpack.c.l.b16 %v501
      %v538 = vunpack.c.l.b16 %v502
      %v539 = vunpack.c.l.b16 %v503
      %v540 = vunpack.c.l.b16 %v504
      %v541 = vunpack.c.l.b16 %v505
      %v542 = vunpack.c.l.b16 %v506
      %v543 = vpack.c.b16 %v528, %v527
      %v544 = vpack.c.b16 %v530, %v529
      %v545 = vpack.c.b16 %v532, %v531
      %v546 = vpack.c.b16 %v534, %v533
      %v547 = vpack.c.b16 %v536, %v535
      %v548 = vpack.c.b16 %v538, %v537
      %v549 = vpack.c.b16 %v540, %v539
      %v550 = vpack.c.b16 %v542, %v541
      %559 = vmatprep.subr.bf16.mxu0 0
      %560 = vmatpush1.bf16.msra.mxu0 %v543
      %561 = vmatprep.subr.bf16.mxu0 0
      %562 = vmatpush1.bf16.msra.mxu0 %v544
      %563 = vmatprep.subr.bf16.mxu0 0
      %564 = vmatpush1.bf16.msra.mxu0 %v545
      %565 = vmatprep.subr.bf16.mxu0 0
      %566 = vmatpush1.bf16.msra.mxu0 %v546
      %567 = vmatprep.subr.bf16.mxu0 0
      %568 = vmatpush1.bf16.msra.mxu0 %v547
      %569 = vmatprep.subr.bf16.mxu0 0
      %570 = vmatpush1.bf16.msra.mxu0 %v548
      %571 = vmatprep.subr.bf16.mxu0 0
      %572 = vmatpush1.bf16.msra.mxu0 %v549
      %573 = vmatprep.subr.bf16.mxu0 0
      %574 = vmatpush1.bf16.msra.mxu0 %v550
      %575 = vmatprep.subr.bf16.mxu0 0
      %576 = vmatpush1.bf16.msra.mxu0 0
      %577 = vmatprep.subr.bf16.mxu0 0
      %578 = vmatpush1.bf16.msra.mxu0 0
      %579 = vmatprep.subr.bf16.mxu0 0
      %580 = vmatpush1.bf16.msra.mxu0 0
      %581 = vmatprep.subr.bf16.mxu0 0
      %582 = vmatpush1.bf16.msra.mxu0 0
      %583 = vmatprep.subr.bf16.mxu0 0
      %584 = vmatpush1.bf16.msra.mxu0 0
      %585 = vmatprep.subr.bf16.mxu0 0
      %586 = vmatpush1.bf16.msra.mxu0 0
      %587 = vmatprep.subr.bf16.mxu0 0
      %588 = vmatpush1.bf16.msra.mxu0 0
      %589 = vmatprep.subr.bf16.mxu0 0
      %590 = vmatpush1.bf16.msra.mxu0 0
      %591 = vmatprep.mubr.bf16.mxu0 0
      %592 = vmatmul.mubr.bf16.gmra.mrb[0].mxu0 %v488
      %v593 = vpop.f32.mrb[0].mxu0
      %v594 = vadd.f32 %v510, %v593
      %v595 = vpop.f32.mrb[0].mxu0
      %v596 = vpop.f32.mrb[0].mxu0
      %v597 = vadd.f32 %v510, %v596
      %v598 = vpop.f32.mrb[0].mxu0
      %599 = vmatprep.mubr.bf16.mxu0 0
      %600 = vmatmul.mubr.bf16.gmra.mrb[0].mxu0 %v489
      %v601 = vpop.f32.mrb[0].mxu0
      %v602 = vadd.f32 %v510, %v601
      %v603 = vpop.f32.mrb[0].mxu0
      %v604 = vpop.f32.mrb[0].mxu0
      %v605 = vadd.f32 %v510, %v604
      %v606 = vpop.f32.mrb[0].mxu0
      %607 = vdwg.mxu0
      %v608 = vmax.f32 %v594, 0.0
      %v609 = vmax.f32 %v597, 0.0
      %v610 = vmax.f32 %v602, 0.0
      %v611 = vmax.f32 %v605, 0.0
      %v612 = vpack.c.bf16 %v609, %v608
      %v613 = vpack.c.bf16 %v611, %v610
      %v614 = vld [vmem:[%s5] sm:$0xf]
      %v615 = vld [vmem:[%s5 + $0x4] sm:$0xf]
      %v616 = vld [vmem:[%s5 + $0x8] sm:$0xf]
      %v617 = vld [vmem:[%s5 + $0xc] sm:$0xf]
      %v618 = vld [vmem:[%s5 + $0x10] sm:$0xf]
      %v619 = vld [vmem:[%s5 + $0x14] sm:$0xf]
      %v620 = vld [vmem:[%s5 + $0x18] sm:$0xf]
      %v621 = vld [vmem:[%s5 + $0x1c] sm:$0xf]
      %v622 = vld [vmem:[%s5 + $0x20] sm:$0xf]
      %v623 = vld [vmem:[%s5 + $0x24] sm:$0xf]
      %v624 = vld [vmem:[%s5 + $0x28] sm:$0xf]
      %v625 = vld [vmem:[%s5 + $0x2c] sm:$0xf]
      %v626 = vld [vmem:[%s5 + $0x30] sm:$0xf]
      %v627 = vld [vmem:[%s5 + $0x34] sm:$0xf]
      %v628 = vld [vmem:[%s5 + $0x38] sm:$0xf]
      %v629 = vld [vmem:[%s5 + $0x3c] sm:$0xf]
      %v630 = vld [vmem:[%s6] sm:$0x1]
      %v632 = vlaneseq
      %v633 = vshrl.u32 %v632, 7
      %v634 = vsub.s32 0, %v633
      %v635 = vrot.slane %v630, %v634
      %v653 = vunpack.c.l.b16 %v614
      %v654 = vunpack.c.l.b16 %v615
      %v655 = vunpack.c.l.b16 %v616
      %v656 = vunpack.c.l.b16 %v617
      %v657 = vunpack.c.l.b16 %v618
      %v658 = vunpack.c.l.b16 %v619
      %v659 = vunpack.c.l.b16 %v620
      %v660 = vunpack.c.l.b16 %v621
      %v661 = vunpack.c.l.b16 %v622
      %v662 = vunpack.c.l.b16 %v623
      %v663 = vunpack.c.l.b16 %v624
      %v664 = vunpack.c.l.b16 %v625
      %v665 = vunpack.c.l.b16 %v626
      %v666 = vunpack.c.l.b16 %v627
      %v667 = vunpack.c.l.b16 %v628
      %v668 = vunpack.c.l.b16 %v629
      %v669 = vpack.c.b16 %v654, %v653
      %v670 = vpack.c.b16 %v656, %v655
      %v671 = vpack.c.b16 %v658, %v657
      %v672 = vpack.c.b16 %v660, %v659
      %v673 = vpack.c.b16 %v662, %v661
      %v674 = vpack.c.b16 %v664, %v663
      %v675 = vpack.c.b16 %v666, %v665
      %v676 = vpack.c.b16 %v668, %v667
      %685 = vmatprep.subr.bf16.mxu0 0
      %686 = vmatpush1.bf16.msra.mxu0 %v669
      %687 = vmatprep.subr.bf16.mxu0 0
      %688 = vmatpush1.bf16.msra.mxu0 %v670
      %689 = vmatprep.subr.bf16.mxu0 0
      %690 = vmatpush1.bf16.msra.mxu0 %v671
      %691 = vmatprep.subr.bf16.mxu0 0
      %692 = vmatpush1.bf16.msra.mxu0 %v672
      %693 = vmatprep.subr.bf16.mxu0 0
      %694 = vmatpush1.bf16.msra.mxu0 %v673
      %695 = vmatprep.subr.bf16.mxu0 0
      %696 = vmatpush1.bf16.msra.mxu0 %v674
      %697 = vmatprep.subr.bf16.mxu0 0
      %698 = vmatpush1.bf16.msra.mxu0 %v675
      %699 = vmatprep.subr.bf16.mxu0 0
      %700 = vmatpush1.bf16.msra.mxu0 %v676
      %701 = vmatprep.subr.bf16.mxu0 0
      %702 = vmatpush1.bf16.msra.mxu0 0
      %703 = vmatprep.subr.bf16.mxu0 0
      %704 = vmatpush1.bf16.msra.mxu0 0
      %705 = vmatprep.subr.bf16.mxu0 0
      %706 = vmatpush1.bf16.msra.mxu0 0
      %707 = vmatprep.subr.bf16.mxu0 0
      %708 = vmatpush1.bf16.msra.mxu0 0
      %709 = vmatprep.subr.bf16.mxu0 0
      %710 = vmatpush1.bf16.msra.mxu0 0
      %711 = vmatprep.subr.bf16.mxu0 0
      %712 = vmatpush1.bf16.msra.mxu0 0
      %713 = vmatprep.subr.bf16.mxu0 0
      %714 = vmatpush1.bf16.msra.mxu0 0
      %715 = vmatprep.subr.bf16.mxu0 0
      %716 = vmatpush1.bf16.msra.mxu0 0
      %717 = vmatprep.mubr.bf16.mxu0 0
      %718 = vmatmul.mubr.bf16.gmra.mrb[0].mxu0 %v612
      %v719 = vpop.f32.mrb[0].mxu0
      %v720 = vadd.f32 %v635, %v719
      %v721 = vpop.f32.mrb[0].mxu0
      %v722 = vpop.f32.mrb[0].mxu0
      %v723 = vadd.f32 %v635, %v722
      %v724 = vpop.f32.mrb[0].mxu0
      %725 = vmatprep.mubr.bf16.mxu0 0
      %726 = vmatmul.mubr.bf16.gmra.mrb[0].mxu0 %v613
      %v727 = vpop.f32.mrb[0].mxu0
      %v728 = vadd.f32 %v635, %v727
      %v729 = vpop.f32.mrb[0].mxu0
      %v730 = vpop.f32.mrb[0].mxu0
      %v731 = vadd.f32 %v635, %v730
      %v732 = vpop.f32.mrb[0].mxu0
      %733 = vdwg.mxu0
      %vm734 = vcmask 31744
      %735 = vst.msk [vmem:[%s280] sm:$0xff] %vm734, %v720
      %736 = vst.msk [vmem:[%s280 + $0x8] sm:$0xff] %vm734, %v723
      %737 = vst.msk [vmem:[%s280 + $0x10] sm:$0xff] %vm734, %v728
      %738 = vst.msk [vmem:[%s280 + $0x18] sm:$0xff] %vm734, %v731
      %s739 = smul.u32 4, %s18
      %p740 = scmp.lt.s32.totalorder %s739, 7
      %s741 = scalar_select %p740, %s739, 7
      %s742 = smul.addr %s741, 8
      %s743 = scalar_lea.vmem %s7, %s742
      // Predicated region
      $region49: #{tpu_custom_call.1} parent=47 // pred_check
        %p744 = pneg %p188
      $region50: #{tpu_custom_call.1} parent=47 // pred_check_branch
        %746 = sbr.rel (%p744) target = $region52
      $region51: #{tpu_custom_call.1} parent=47 // pred_region
        %s747 = smul.u32 4, %s18
      $region52: #{tpu_custom_call.1} parent=47 // pred_fallthru
        _
    $region48: #{tpu_custom_call.1} parent=5 // pred_fallthru
      _
    %p748 = scmp.le.s32.totalorder 2, %s13
    // Predicated region
    $region53: #{tpu_custom_call.1} parent=5 // pred_check
      %p749 = pneg %p748
    $region54: #{tpu_custom_call.1} parent=5 // pred_check_branch
      %751 = sbr.rel (%p749) target = $region56
    $region55: #{tpu_custom_call.1} parent=5 // pred_region
      %s752 = ssub.s32 %s13, 2
      // Predicated region
      $region57: #{tpu_custom_call.1} parent=55 // pred_check
        %p753 = pneg %p194
      $region58: #{tpu_custom_call.1} parent=55 // pred_check_branch
        %755 = sbr.rel (%p753) target = $region60
      $region59: #{tpu_custom_call.1} parent=55 // pred_region
        %s756 = smul.u32 4, %s19
        %p757 = scmp.lt.s32.totalorder %s756, 7
        %s758 = scalar_select %p757, %s756, 7
        %s759 = smul.addr %s758, 8
        %s760 = scalar_lea.vmem %s7, %s759
      $region60: #{tpu_custom_call.1} parent=55 // pred_fallthru
        _
    $region56: #{tpu_custom_call.1} parent=5 // pred_fallthru
      _
  $region6: #{tpu_custom_call.1} parent=0 // loop_footer
    %s17 = sadd.s32 1, %s13
  $region7: #{tpu_custom_call.1} parent=0 // loop_footer_branch
    %12 = sbr.rel target = $region3
  $region8: #{tpu_custom_call.1} parent=0 // loop_exit
    _

</llo_original>
